<compile_context>
chip_gen: v7x
topology: tpu7x:2x2x1
jax: 0.10.0
libtpu: 0.0.40
codegen_flags: <defaults>
</compile_context>

<pallas_src>
import jax
import jax.numpy as jnp
from jax.experimental import pallas as pl
from jax.experimental.pallas import tpu as pltpu

LANE = 128


def _round_up(x, m):
    return ((x + m - 1) // m) * m


def _choose_tile_m(m, max_tile):
    """Row-tile size: multiple of 8, minimal padding, <= max_tile."""
    n_blocks = max(1, -(-m // max_tile))
    return _round_up(-(-m // n_blocks), 8)


# ----------------------------------------------------------------------------
# Pallas kernels
# ----------------------------------------------------------------------------
def _conv_pool_matmul_kernel(p_ref, w_ref, b_ref, o_ref):
    """Fused conv+avgpool tile: (TM, K) x (K, 128n) on the MXU + bias.

    The 2x2/stride-2 average pool is already folded into w_ref (6x6, stride-2
    effective kernel), so this single matmul writes the *pooled* conv output.
    """
    acc = jnp.dot(p_ref[...], w_ref[...], preferred_element_type=jnp.float32)
    o_ref[...] = (acc + b_ref[...]).astype(o_ref.dtype)


def _fc_tail_kernel(x_ref, w1, b1, w2, b2, wh1, bh1, wh2, bh2, wh3, bh3,
                    h_ref, x_out_ref, y_ref):
    """Whole FC tail (l1 -> l2 -> h1 -> h2 -> h3) in one kernel.

    All five weights stay VMEM-resident; intermediates live in vregs, so the
    only HBM traffic is the flat input and the three outputs.  Matmul inputs
    are bf16, accumulation/bias/ReLU are f32.
    """
    def dense(a, w_ref, b_ref, relu):
        w = w_ref[...]
        y = jnp.dot(a.astype(w.dtype), w,
                    preferred_element_type=jnp.float32) + b_ref[...]
        return jnp.maximum(y, 0.0) if relu else y

    a1 = dense(x_ref[...], w1, b1, relu=True)     # l1 + ReLU
    a2 = dense(a1, w2, b2, relu=True)             # l2 + ReLU  -> h
    h_ref[...] = a2.astype(h_ref.dtype)
    a3 = dense(a2, wh1, bh1, relu=True)           # h1 + ReLU
    a4 = dense(a3, wh2, bh2, relu=False)          # h2         -> x
    x_out_ref[...] = a4.astype(x_out_ref.dtype)
    a5 = dense(a4, wh3, bh3, relu=False)          # h3         -> y
    y_ref[...] = a5.astype(y_ref.dtype)


# ----------------------------------------------------------------------------
# Pallas wrappers
# ----------------------------------------------------------------------------
def conv_pool_pallas(patches, w, b, *, out_dtype=jnp.bfloat16, max_tile=512):
    """(M, K) pooled-conv patches x (K, Npad) fused weight + bias."""
    M, K = patches.shape
    N = w.shape[1]
    tile_m = _choose_tile_m(M, max_tile)
    m_pad = _round_up(M, tile_m)
    if m_pad != M:
        patches = jnp.pad(patches, ((0, m_pad - M), (0, 0)))
    out = pl.pallas_call(
        _conv_pool_matmul_kernel,
        out_shape=jax.ShapeDtypeStruct((m_pad, N), out_dtype),
        grid=(m_pad // tile_m,),
        in_specs=[
            pl.BlockSpec((tile_m, K), lambda i: (i, 0)),
            pl.BlockSpec((K, N), lambda i: (0, 0)),
            pl.BlockSpec((1, N), lambda i: (0, 0)),
        ],
        out_specs=pl.BlockSpec((tile_m, N), lambda i: (i, 0)),
        compiler_params=pltpu.CompilerParams(
            dimension_semantics=("parallel",)),
    )(patches, w, b)
    return out[:M]


_FC_KEYS = ("w_l1", "b_l1", "w_l2", "b_l2", "w_h1", "b_h1",
            "w_h2", "b_h2", "w_h3", "b_h3")


def fc_tail_pallas(flat, params, *, max_tile=128):
    """Fused l1/l2/h1/h2/h3 tail. flat: (B, 800) bf16. Returns f32 (h, x, y)."""
    B, K = flat.shape
    tile_m = _choose_tile_m(B, max_tile)
    m_pad = _round_up(B, tile_m)
    if m_pad != B:
        flat = jnp.pad(flat, ((0, m_pad - B), (0, 0)))
    w_specs = [pl.BlockSpec(params[k].shape, lambda i: (0, 0)) for k in _FC_KEYS]
    h, x_out, y_out = pl.pallas_call(
        _fc_tail_kernel,
        out_shape=(jax.ShapeDtypeStruct((m_pad, 128), jnp.float32),
                   jax.ShapeDtypeStruct((m_pad, 256), jnp.float32),
                   jax.ShapeDtypeStruct((m_pad, 128), jnp.float32)),
        grid=(m_pad // tile_m,),
        in_specs=[pl.BlockSpec((tile_m, K), lambda i: (i, 0))] + w_specs,
        out_specs=(pl.BlockSpec((tile_m, 128), lambda i: (i, 0)),
                   pl.BlockSpec((tile_m, 256), lambda i: (i, 0)),
                   pl.BlockSpec((tile_m, 128), lambda i: (i, 0))),
        compiler_params=pltpu.CompilerParams(
            dimension_semantics=("parallel",)),
    )(flat, *[params[k] for k in _FC_KEYS])
    return h[:B, :84], x_out[:B, :256], y_out[:B, :10]


# ----------------------------------------------------------------------------
# JAX glue: im2col (stride 2) and pool-into-weight fusion / padding
# ----------------------------------------------------------------------------
def _im2col_stride2(x_nhwc, k):
    """Extract kxk patches at stride 2. Feature order (ky, kx, cin) matches the
    fused conv weight matrices built below. (Pure data movement.)"""
    B, H, W, C = x_nhwc.shape
    Ho = (H - k) // 2 + 1
    Wo = (W - k) // 2 + 1
    cols = []
    for ky in range(k):
        for kx in range(k):
            cols.append(x_nhwc[:, ky:ky + 2 * Ho - 1:2, kx:kx + 2 * Wo - 1:2, :])
    patches = jnp.concatenate(cols, axis=-1)          # (B, Ho, Wo, k*k*C)
    return patches.reshape(B * Ho * Wo, k * k * C), (B, Ho, Wo)


def _pool_fuse_conv_weight(w):
    """Fold AvgPool2d(2,2) into a 5x5 conv weight -> (6*6*cin, cout) matrix.

    avgpool(conv5x5_s1(x)) == conv6x6_s2(x, W') with
    W'[a,b] = 0.25 * sum_{dp,dq in {0,1}} W[a-dp, b-dq] (valid indices only).
    """
    kh, kw, cin, cout = w.shape
    wp = jnp.zeros((kh + 1, kw + 1, cin, cout), jnp.float32)
    for dp in (0, 1):
        for dq in (0, 1):
            wp = wp.at[dp:dp + kh, dq:dq + kw].add(w.astype(jnp.float32))
    wp = 0.25 * wp
    return wp.reshape((kh + 1) * (kw + 1) * cin, cout)


def _pad2d(a, rows, cols):
    return jnp.pad(a, ((0, rows - a.shape[0]), (0, cols - a.shape[1])))


def prepare_params(p, compute_dtype=jnp.bfloat16):
    """Fuse the pool into the conv weights, pad N (and chained K) dims to 128,
    cast MXU inputs to bf16, keep biases in f32."""
    def w(a, rows=None):
        r, c = a.shape
        rows = r if rows is None else rows
        return _pad2d(a, rows, _round_up(c, LANE)).astype(compute_dtype)

    def b(a):
        n = a.shape[0]
        return _pad2d(a.reshape(1, n), 1, _round_up(n, LANE)).astype(jnp.float32)

    wc1 = _pool_fuse_conv_weight(p["w_conv1"])            # (108, 16)
    wc2 = _pool_fuse_conv_weight(p["w_conv2"])            # (576, 32)
    return {
        "w_conv1": w(wc1),                 "b_conv1": b(p["b_conv1"]),   # (108,128)
        "w_conv2": w(wc2),                 "b_conv2": b(p["b_conv2"]),   # (576,128)
        "w_l1": w(p["w_l1"]),              "b_l1": b(p["b_l1"]),         # (800,128)
        "w_l2": w(p["w_l2"], rows=LANE),   "b_l2": b(p["b_l2"]),         # (128,128)
        "w_h1": w(p["w_h1"], rows=LANE),   "b_h1": b(p["b_h1"]),         # (128,128)
        "w_h2": w(p["w_h2"], rows=LANE),   "b_h2": b(p["b_h2"]),         # (128,256)
        "w_h3": w(p["w_h3"]),              "b_h3": b(p["b_h3"]),         # (256,128)
    }


# ----------------------------------------------------------------------------
# MOONLeNet forward
# ----------------------------------------------------------------------------
def moon_lenet_forward(x_nchw, params):
    B = x_nchw.shape[0]
    # NHWC, bf16 (halves im2col HBM bytes, feeds MXU directly).
    x = jnp.transpose(x_nchw, (0, 2, 3, 1)).astype(jnp.bfloat16)

    # conv1 (3->16, k=5, no activation) + avgpool 2x2, fused into one matmul.
    p1, (_, Ho1, Wo1) = _im2col_stride2(x, 6)                  # (B*14*14, 108)
    pool1 = conv_pool_pallas(p1, params["w_conv1"], params["b_conv1"])
    pool1 = pool1[:, :16].reshape(B, Ho1, Wo1, 16)             # (B,14,14,16)

    # conv2 (16->32, k=5, no activation) + avgpool 2x2, fused into one matmul.
    p2, (_, Ho2, Wo2) = _im2col_stride2(pool1, 6)              # (B*5*5, 576)
    pool2 = conv_pool_pallas(p2, params["w_conv2"], params["b_conv2"])
    pool2 = pool2[:, :32].reshape(B, Ho2, Wo2, 32)             # (B,5,5,32)

    # flatten in PyTorch NCHW order: (B, 32, 5, 5) -> (B, 800)
    flat = jnp.transpose(pool2, (0, 3, 1, 2)).reshape(B, 32 * 5 * 5)

    # Whole FC tail in one Pallas call.
    h, x_out, y_out = fc_tail_pallas(flat, params)

    h_sq = jnp.squeeze(h)                   # matches PyTorch x.squeeze()
    if h_sq.ndim == 1:                      # batch of 1: downstream tensors are 1-D
        return h_sq, x_out[0], y_out[0]
    return h_sq, x_out, y_out


# ----------------------------------------------------------------------------
# Deterministic parameter init (synthetic weights; shapes from __init__)
# ----------------------------------------------------------------------------
def init_params(key):
    ks = jax.random.split(key, 18)
    init = lambda k, shape, s=0.05: s * jax.random.normal(k, shape, jnp.float32)
    return {
        # conv weights stored as (kh, kw, cin, cout); linear weights as (in, out).
        "w_conv1": init(ks[0], (5, 5, 3, 16)),  "b_conv1": init(ks[1], (16,)),
        "w_conv2": init(ks[2], (5, 5, 16, 32)), "b_conv2": init(ks[3], (32,)),
        "w_l1": init(ks[4], (32 * 5 * 5, 120)), "b_l1": init(ks[5], (120,)),
        "w_l2": init(ks[6], (120, 84)),         "b_l2": init(ks[7], (84,)),
        "w_l3": init(ks[8], (84, 10)),          "b_l3": init(ks[9], (10,)),  # unused in forward (as in PyTorch)
        "w_h1": init(ks[10], (84, 84)),         "b_h1": init(ks[11], (84,)),
        "w_h2": init(ks[12], (84, 256)),        "b_h2": init(ks[13], (256,)),
        "w_h3": init(ks[14], (256, 10)),        "b_h3": init(ks[15], (10,)),
    }


if __name__ == "__main__":
    key = jax.random.PRNGKey(0)
    k_param, k_x = jax.random.split(key)
    raw_params = init_params(k_param)
    params = prepare_params(raw_params)   # one-time weight fusion / padding / bf16

    # Input must be (B, 3, 32, 32): the 32*5*5 flatten fixes channels=3 and
    # spatial=32; batch kept small (B=2).
    x = jax.random.normal(k_x, (2, 3, 32, 32), jnp.float32)

    fwd = jax.jit(moon_lenet_forward)
    h, x_out, y_out = fwd(x, params)
    jax.block_until_ready((h, x_out, y_out))

    assert h.shape == (2, 84)
    assert x_out.shape == (2, 256)
    assert y_out.shape == (2, 10)
    print("KERNEL_OK")
</pallas_src>

<mosaic_0001>
module attributes {stable_mosaic.version = 11 : i64} {
  func.func @_conv_pool_matmul_kernel(%arg0: i32, %arg1: memref<392x108xbf16, #tpu.memory_space<vmem>>, %arg2: memref<108x128xbf16, #tpu.memory_space<vmem>>, %arg3: memref<1x128xf32, #tpu.memory_space<vmem>>, %arg4: memref<392x128xbf16, #tpu.memory_space<vmem>>) attributes {dimension_semantics = [#tpu.dimension_semantics<parallel>], iteration_bounds = array<i64: 1>, scalar_prefetch = 0 : i64, scratch_operands = 0 : i64, tpu.core_type = #tpu.core_type<tc>, window_params = [{transform_indices = @transform_0, window_bounds = array<i64: 392, 108>}, {pipeline_mode = #tpu.pipeline_mode<synchronous>, transform_indices = @transform_1, window_bounds = array<i64: 108, 128>}, {pipeline_mode = #tpu.pipeline_mode<synchronous>, transform_indices = @transform_2, window_bounds = array<i64: 1, 128>}, {transform_indices = @transform_3, window_bounds = array<i64: 392, 128>}]} {
    %c0 = arith.constant 0 : index
    %c0_0 = arith.constant 0 : index
    %0 = vector.load %arg1[%c0, %c0_0] : memref<392x108xbf16, #tpu.memory_space<vmem>>, vector<392x108xbf16>
    %c0_1 = arith.constant 0 : index
    %c0_2 = arith.constant 0 : index
    %1 = vector.load %arg2[%c0_1, %c0_2] : memref<108x128xbf16, #tpu.memory_space<vmem>>, vector<108x128xbf16>
    %cst = arith.constant dense<0.000000e+00> : vector<392x128xf32>
    %2 = tpu.matmul %0, %1, %cst {dimension_numbers = #tpu.dot_dimension_numbers<[1], [0], [0], [1], [0, 0, 1, 1], [], []>} : vector<392x108xbf16>, vector<108x128xbf16>, vector<392x128xf32> -> vector<392x128xf32>
    %c0_3 = arith.constant 0 : index
    %c0_4 = arith.constant 0 : index
    %3 = vector.load %arg3[%c0_3, %c0_4] : memref<1x128xf32, #tpu.memory_space<vmem>>, vector<1x128xf32>
    %4 = vector.broadcast %3 : vector<1x128xf32> to vector<392x128xf32>
    %5 = arith.addf %2, %4 : vector<392x128xf32>
    %6 = arith.truncf %5 : vector<392x128xf32> to vector<392x128xbf16>
    %c0_5 = arith.constant 0 : index
    %c0_6 = arith.constant 0 : index
    %7 = vector.load %arg4[%c0_5, %c0_6] : memref<392x128xbf16, #tpu.memory_space<vmem>>, vector<392x128xbf16>
    tpu.vector_store %arg4[%c0_5, %c0_6], %6 {strides = array<i32>} : memref<392x128xbf16, #tpu.memory_space<vmem>>, vector<392x128xbf16>,
    return
  }
  func.func @transform_0(%arg0: i32) -> (i32, i32) {
    %c0_i32 = arith.constant 0 : i32
    %c0_i32_0 = arith.constant 0 : i32
    return %arg0, %c0_i32 : i32, i32
  }
  func.func @transform_1(%arg0: i32) -> (i32, i32) {
    %c0_i32 = arith.constant 0 : i32
    %c0_i32_0 = arith.constant 0 : i32
    %c0_i32_1 = arith.constant 0 : i32
    return %c0_i32, %c0_i32_0 : i32, i32
  }
  func.func @transform_2(%arg0: i32) -> (i32, i32) {
    %c0_i32 = arith.constant 0 : i32
    %c0_i32_0 = arith.constant 0 : i32
    %c0_i32_1 = arith.constant 0 : i32
    return %c0_i32, %c0_i32_0 : i32, i32
  }
  func.func @transform_3(%arg0: i32) -> (i32, i32) {
    %c0_i32 = arith.constant 0 : i32
    %c0_i32_0 = arith.constant 0 : i32
    return %arg0, %c0_i32 : i32, i32
  }
}

module attributes {stable_mosaic.version = 11 : i64} {
  func.func @_conv_pool_matmul_kernel(%arg0: i32, %arg1: memref<56x576xbf16, #tpu.memory_space<vmem>>, %arg2: memref<576x128xbf16, #tpu.memory_space<vmem>>, %arg3: memref<1x128xf32, #tpu.memory_space<vmem>>, %arg4: memref<56x128xbf16, #tpu.memory_space<vmem>>) attributes {dimension_semantics = [#tpu.dimension_semantics<parallel>], iteration_bounds = array<i64: 1>, scalar_prefetch = 0 : i64, scratch_operands = 0 : i64, tpu.core_type = #tpu.core_type<tc>, window_params = [{transform_indices = @transform_0, window_bounds = array<i64: 56, 576>}, {pipeline_mode = #tpu.pipeline_mode<synchronous>, transform_indices = @transform_1, window_bounds = array<i64: 576, 128>}, {pipeline_mode = #tpu.pipeline_mode<synchronous>, transform_indices = @transform_2, window_bounds = array<i64: 1, 128>}, {transform_indices = @transform_3, window_bounds = array<i64: 56, 128>}]} {
    %c0 = arith.constant 0 : index
    %c0_0 = arith.constant 0 : index
    %0 = vector.load %arg1[%c0, %c0_0] : memref<56x576xbf16, #tpu.memory_space<vmem>>, vector<56x576xbf16>
    %c0_1 = arith.constant 0 : index
    %c0_2 = arith.constant 0 : index
    %1 = vector.load %arg2[%c0_1, %c0_2] : memref<576x128xbf16, #tpu.memory_space<vmem>>, vector<576x128xbf16>
    %cst = arith.constant dense<0.000000e+00> : vector<56x128xf32>
    %2 = tpu.matmul %0, %1, %cst {dimension_numbers = #tpu.dot_dimension_numbers<[1], [0], [0], [1], [0, 0, 1, 1], [], []>} : vector<56x576xbf16>, vector<576x128xbf16>, vector<56x128xf32> -> vector<56x128xf32>
    %c0_3 = arith.constant 0 : index
    %c0_4 = arith.constant 0 : index
    %3 = vector.load %arg3[%c0_3, %c0_4] : memref<1x128xf32, #tpu.memory_space<vmem>>, vector<1x128xf32>
    %4 = vector.broadcast %3 : vector<1x128xf32> to vector<56x128xf32>
    %5 = arith.addf %2, %4 : vector<56x128xf32>
    %6 = arith.truncf %5 : vector<56x128xf32> to vector<56x128xbf16>
    %c0_5 = arith.constant 0 : index
    %c0_6 = arith.constant 0 : index
    %7 = vector.load %arg4[%c0_5, %c0_6] : memref<56x128xbf16, #tpu.memory_space<vmem>>, vector<56x128xbf16>
    tpu.vector_store %arg4[%c0_5, %c0_6], %6 {strides = array<i32>} : memref<56x128xbf16, #tpu.memory_space<vmem>>, vector<56x128xbf16>,
    return
  }
  func.func @transform_0(%arg0: i32) -> (i32, i32) {
    %c0_i32 = arith.constant 0 : i32
    %c0_i32_0 = arith.constant 0 : i32
    return %arg0, %c0_i32 : i32, i32
  }
  func.func @transform_1(%arg0: i32) -> (i32, i32) {
    %c0_i32 = arith.constant 0 : i32
    %c0_i32_0 = arith.constant 0 : i32
    %c0_i32_1 = arith.constant 0 : i32
    return %c0_i32, %c0_i32_0 : i32, i32
  }
  func.func @transform_2(%arg0: i32) -> (i32, i32) {
    %c0_i32 = arith.constant 0 : i32
    %c0_i32_0 = arith.constant 0 : i32
    %c0_i32_1 = arith.constant 0 : i32
    return %c0_i32, %c0_i32_0 : i32, i32
  }
  func.func @transform_3(%arg0: i32) -> (i32, i32) {
    %c0_i32 = arith.constant 0 : i32
    %c0_i32_0 = arith.constant 0 : i32
    return %arg0, %c0_i32 : i32, i32
  }
}

module attributes {stable_mosaic.version = 11 : i64} {
  func.func @_fc_tail_kernel(%arg0: i32, %arg1: memref<8x800xbf16, #tpu.memory_space<vmem>>, %arg2: memref<800x128xbf16, #tpu.memory_space<vmem>>, %arg3: memref<1x128xf32, #tpu.memory_space<vmem>>, %arg4: memref<128x128xbf16, #tpu.memory_space<vmem>>, %arg5: memref<1x128xf32, #tpu.memory_space<vmem>>, %arg6: memref<128x128xbf16, #tpu.memory_space<vmem>>, %arg7: memref<1x128xf32, #tpu.memory_space<vmem>>, %arg8: memref<128x256xbf16, #tpu.memory_space<vmem>>, %arg9: memref<1x256xf32, #tpu.memory_space<vmem>>, %arg10: memref<256x128xbf16, #tpu.memory_space<vmem>>, %arg11: memref<1x128xf32, #tpu.memory_space<vmem>>, %arg12: memref<8x128xf32, #tpu.memory_space<vmem>>, %arg13: memref<8x256xf32, #tpu.memory_space<vmem>>, %arg14: memref<8x128xf32, #tpu.memory_space<vmem>>) attributes {dimension_semantics = [#tpu.dimension_semantics<parallel>], iteration_bounds = array<i64: 1>, scalar_prefetch = 0 : i64, scratch_operands = 0 : i64, tpu.core_type = #tpu.core_type<tc>, window_params = [{transform_indices = @transform_0, window_bounds = array<i64: 8, 800>}, {pipeline_mode = #tpu.pipeline_mode<synchronous>, transform_indices = @transform_1, window_bounds = array<i64: 800, 128>}, {pipeline_mode = #tpu.pipeline_mode<synchronous>, transform_indices = @transform_2, window_bounds = array<i64: 1, 128>}, {pipeline_mode = #tpu.pipeline_mode<synchronous>, transform_indices = @transform_3, window_bounds = array<i64: 128, 128>}, {pipeline_mode = #tpu.pipeline_mode<synchronous>, transform_indices = @transform_4, window_bounds = array<i64: 1, 128>}, {pipeline_mode = #tpu.pipeline_mode<synchronous>, transform_indices = @transform_5, window_bounds = array<i64: 128, 128>}, {pipeline_mode = #tpu.pipeline_mode<synchronous>, transform_indices = @transform_6, window_bounds = array<i64: 1, 128>}, {pipeline_mode = #tpu.pipeline_mode<synchronous>, transform_indices = @transform_7, window_bounds = array<i64: 128, 256>}, {pipeline_mode = #tpu.pipeline_mode<synchronous>, transform_indices = @transform_8, window_bounds = array<i64: 1, 256>}, {pipeline_mode = #tpu.pipeline_mode<synchronous>, transform_indices = @transform_9, window_bounds = array<i64: 256, 128>}, {pipeline_mode = #tpu.pipeline_mode<synchronous>, transform_indices = @transform_10, window_bounds = array<i64: 1, 128>}, {transform_indices = @transform_11, window_bounds = array<i64: 8, 128>}, {transform_indices = @transform_12, window_bounds = array<i64: 8, 256>}, {transform_indices = @transform_13, window_bounds = array<i64: 8, 128>}]} {
    %c0 = arith.constant 0 : index
    %c0_0 = arith.constant 0 : index
    %0 = vector.load %arg1[%c0, %c0_0] : memref<8x800xbf16, #tpu.memory_space<vmem>>, vector<8x800xbf16>
    %c0_1 = arith.constant 0 : index
    %c0_2 = arith.constant 0 : index
    %1 = vector.load %arg2[%c0_1, %c0_2] : memref<800x128xbf16, #tpu.memory_space<vmem>>, vector<800x128xbf16>
    %cst = arith.constant dense<0.000000e+00> : vector<8x128xf32>
    %2 = tpu.matmul %0, %1, %cst {dimension_numbers = #tpu.dot_dimension_numbers<[1], [0], [0], [1], [0, 0, 1, 1], [], []>} : vector<8x800xbf16>, vector<800x128xbf16>, vector<8x128xf32> -> vector<8x128xf32>
    %c0_3 = arith.constant 0 : index
    %c0_4 = arith.constant 0 : index
    %3 = vector.load %arg3[%c0_3, %c0_4] : memref<1x128xf32, #tpu.memory_space<vmem>>, vector<1x128xf32>
    %4 = vector.broadcast %3 : vector<1x128xf32> to vector<8x128xf32>
    %5 = arith.addf %2, %4 : vector<8x128xf32>
    %cst_5 = arith.constant 0.000000e+00 : f32
    %6 = vector.broadcast %cst_5 : f32 to vector<8x128xf32>
    %7 = arith.maximumf %5, %6 : vector<8x128xf32>
    %c0_6 = arith.constant 0 : index
    %c0_7 = arith.constant 0 : index
    %8 = vector.load %arg4[%c0_6, %c0_7] : memref<128x128xbf16, #tpu.memory_space<vmem>>, vector<128x128xbf16>
    %9 = arith.truncf %7 : vector<8x128xf32> to vector<8x128xbf16>
    %cst_8 = arith.constant dense<0.000000e+00> : vector<8x128xf32>
    %10 = tpu.matmul %9, %8, %cst_8 {dimension_numbers = #tpu.dot_dimension_numbers<[1], [0], [0], [1], [0, 0, 1, 1], [], []>} : vector<8x128xbf16>, vector<128x128xbf16>, vector<8x128xf32> -> vector<8x128xf32>
    %c0_9 = arith.constant 0 : index
    %c0_10 = arith.constant 0 : index
    %11 = vector.load %arg5[%c0_9, %c0_10] : memref<1x128xf32, #tpu.memory_space<vmem>>, vector<1x128xf32>
    %12 = vector.broadcast %11 : vector<1x128xf32> to vector<8x128xf32>
    %13 = arith.addf %10, %12 : vector<8x128xf32>
    %cst_11 = arith.constant 0.000000e+00 : f32
    %14 = vector.broadcast %cst_11 : f32 to vector<8x128xf32>
    %15 = arith.maximumf %13, %14 : vector<8x128xf32>
    %c0_12 = arith.constant 0 : index
    %c0_13 = arith.constant 0 : index
    %16 = vector.load %arg12[%c0_12, %c0_13] : memref<8x128xf32, #tpu.memory_space<vmem>>, vector<8x128xf32>
    tpu.vector_store %arg12[%c0_12, %c0_13], %15 {strides = array<i32>} : memref<8x128xf32, #tpu.memory_space<vmem>>, vector<8x128xf32>,
    %c0_14 = arith.constant 0 : index
    %c0_15 = arith.constant 0 : index
    %17 = vector.load %arg6[%c0_14, %c0_15] : memref<128x128xbf16, #tpu.memory_space<vmem>>, vector<128x128xbf16>
    %18 = arith.truncf %15 : vector<8x128xf32> to vector<8x128xbf16>
    %cst_16 = arith.constant dense<0.000000e+00> : vector<8x128xf32>
    %19 = tpu.matmul %18, %17, %cst_16 {dimension_numbers = #tpu.dot_dimension_numbers<[1], [0], [0], [1], [0, 0, 1, 1], [], []>} : vector<8x128xbf16>, vector<128x128xbf16>, vector<8x128xf32> -> vector<8x128xf32>
    %c0_17 = arith.constant 0 : index
    %c0_18 = arith.constant 0 : index
    %20 = vector.load %arg7[%c0_17, %c0_18] : memref<1x128xf32, #tpu.memory_space<vmem>>, vector<1x128xf32>
    %21 = vector.broadcast %20 : vector<1x128xf32> to vector<8x128xf32>
    %22 = arith.addf %19, %21 : vector<8x128xf32>
    %cst_19 = arith.constant 0.000000e+00 : f32
    %23 = vector.broadcast %cst_19 : f32 to vector<8x128xf32>
    %24 = arith.maximumf %22, %23 : vector<8x128xf32>
    %c0_20 = arith.constant 0 : index
    %c0_21 = arith.constant 0 : index
    %25 = vector.load %arg8[%c0_20, %c0_21] : memref<128x256xbf16, #tpu.memory_space<vmem>>, vector<128x256xbf16>
    %26 = arith.truncf %24 : vector<8x128xf32> to vector<8x128xbf16>
    %cst_22 = arith.constant dense<0.000000e+00> : vector<8x256xf32>
    %27 = tpu.matmul %26, %25, %cst_22 {dimension_numbers = #tpu.dot_dimension_numbers<[1], [0], [0], [1], [0, 0, 1, 1], [], []>} : vector<8x128xbf16>, vector<128x256xbf16>, vector<8x256xf32> -> vector<8x256xf32>
    %c0_23 = arith.constant 0 : index
    %c0_24 = arith.constant 0 : index
    %28 = vector.load %arg9[%c0_23, %c0_24] : memref<1x256xf32, #tpu.memory_space<vmem>>, vector<1x256xf32>
    %29 = vector.broadcast %28 : vector<1x256xf32> to vector<8x256xf32>
    %30 = arith.addf %27, %29 : vector<8x256xf32>
    %c0_25 = arith.constant 0 : index
    %c0_26 = arith.constant 0 : index
    %31 = vector.load %arg13[%c0_25, %c0_26] : memref<8x256xf32, #tpu.memory_space<vmem>>, vector<8x256xf32>
    tpu.vector_store %arg13[%c0_25, %c0_26], %30 {strides = array<i32>} : memref<8x256xf32, #tpu.memory_space<vmem>>, vector<8x256xf32>,
    %c0_27 = arith.constant 0 : index
    %c0_28 = arith.constant 0 : index
    %32 = vector.load %arg10[%c0_27, %c0_28] : memref<256x128xbf16, #tpu.memory_space<vmem>>, vector<256x128xbf16>
    %33 = arith.truncf %30 : vector<8x256xf32> to vector<8x256xbf16>
    %cst_29 = arith.constant dense<0.000000e+00> : vector<8x128xf32>
    %34 = tpu.matmul %33, %32, %cst_29 {dimension_numbers = #tpu.dot_dimension_numbers<[1], [0], [0], [1], [0, 0, 1, 1], [], []>} : vector<8x256xbf16>, vector<256x128xbf16>, vector<8x128xf32> -> vector<8x128xf32>
    %c0_30 = arith.constant 0 : index
    %c0_31 = arith.constant 0 : index
    %35 = vector.load %arg11[%c0_30, %c0_31] : memref<1x128xf32, #tpu.memory_space<vmem>>, vector<1x128xf32>
    %36 = vector.broadcast %35 : vector<1x128xf32> to vector<8x128xf32>
    %37 = arith.addf %34, %36 : vector<8x128xf32>
    %c0_32 = arith.constant 0 : index
    %c0_33 = arith.constant 0 : index
    %38 = vector.load %arg14[%c0_32, %c0_33] : memref<8x128xf32, #tpu.memory_space<vmem>>, vector<8x128xf32>
    tpu.vector_store %arg14[%c0_32, %c0_33], %37 {strides = array<i32>} : memref<8x128xf32, #tpu.memory_space<vmem>>, vector<8x128xf32>,
    return
  }
  func.func @transform_0(%arg0: i32) -> (i32, i32) {
    %c0_i32 = arith.constant 0 : i32
    %c0_i32_0 = arith.constant 0 : i32
    return %arg0, %c0_i32 : i32, i32
  }
  func.func @transform_1(%arg0: i32) -> (i32, i32) {
    %c0_i32 = arith.constant 0 : i32
    %c0_i32_0 = arith.constant 0 : i32
    %c0_i32_1 = arith.constant 0 : i32
    return %c0_i32, %c0_i32_0 : i32, i32
  }
  func.func @transform_2(%arg0: i32) -> (i32, i32) {
    %c0_i32 = arith.constant 0 : i32
    %c0_i32_0 = arith.constant 0 : i32
    %c0_i32_1 = arith.constant 0 : i32
    return %c0_i32, %c0_i32_0 : i32, i32
  }
  func.func @transform_3(%arg0: i32) -> (i32, i32) {
    %c0_i32 = arith.constant 0 : i32
    %c0_i32_0 = arith.constant 0 : i32
    %c0_i32_1 = arith.constant 0 : i32
    return %c0_i32, %c0_i32_0 : i32, i32
  }
  func.func @transform_4(%arg0: i32) -> (i32, i32) {
    %c0_i32 = arith.constant 0 : i32
    %c0_i32_0 = arith.constant 0 : i32
    %c0_i32_1 = arith.constant 0 : i32
    return %c0_i32, %c0_i32_0 : i32, i32
  }
  func.func @transform_5(%arg0: i32) -> (i32, i32) {
    %c0_i32 = arith.constant 0 : i32
    %c0_i32_0 = arith.constant 0 : i32
    %c0_i32_1 = arith.constant 0 : i32
    return %c0_i32, %c0_i32_0 : i32, i32
  }
  func.func @transform_6(%arg0: i32) -> (i32, i32) {
    %c0_i32 = arith.constant 0 : i32
    %c0_i32_0 = arith.constant 0 : i32
    %c0_i32_1 = arith.constant 0 : i32
    return %c0_i32, %c0_i32_0 : i32, i32
  }
  func.func @transform_7(%arg0: i32) -> (i32, i32) {
    %c0_i32 = arith.constant 0 : i32
    %c0_i32_0 = arith.constant 0 : i32
    %c0_i32_1 = arith.constant 0 : i32
    return %c0_i32, %c0_i32_0 : i32, i32
  }
  func.func @transform_8(%arg0: i32) -> (i32, i32) {
    %c0_i32 = arith.constant 0 : i32
    %c0_i32_0 = arith.constant 0 : i32
    %c0_i32_1 = arith.constant 0 : i32
    return %c0_i32, %c0_i32_0 : i32, i32
  }
  func.func @transform_9(%arg0: i32) -> (i32, i32) {
    %c0_i32 = arith.constant 0 : i32
    %c0_i32_0 = arith.constant 0 : i32
    %c0_i32_1 = arith.constant 0 : i32
    return %c0_i32, %c0_i32_0 : i32, i32
  }
  func.func @transform_10(%arg0: i32) -> (i32, i32) {
    %c0_i32 = arith.constant 0 : i32
    %c0_i32_0 = arith.constant 0 : i32
    %c0_i32_1 = arith.constant 0 : i32
    return %c0_i32, %c0_i32_0 : i32, i32
  }
  func.func @transform_11(%arg0: i32) -> (i32, i32) {
    %c0_i32 = arith.constant 0 : i32
    %c0_i32_0 = arith.constant 0 : i32
    return %arg0, %c0_i32 : i32, i32
  }
  func.func @transform_12(%arg0: i32) -> (i32, i32) {
    %c0_i32 = arith.constant 0 : i32
    %c0_i32_0 = arith.constant 0 : i32
    return %arg0, %c0_i32 : i32, i32
  }
  func.func @transform_13(%arg0: i32) -> (i32, i32) {
    %c0_i32 = arith.constant 0 : i32
    %c0_i32_0 = arith.constant 0 : i32
    return %arg0, %c0_i32 : i32, i32
  }
}

</mosaic_0001>

<llo_original>
// kernel: moon_lenet_forward.3
$region0: #{moon_lenet_forward.3}
  #allocation0 [shape = 'u32[]', space=smem, size = 0x4, offset = 0x4, fixed_abs, tag = 'smem constant byte address 0x4 - core index']
  #allocation1 [shape = 'u32[144,128]{1,0:T(1,128)}', space=vmem, size = 0x12000, scoped, tag = 'internal scratch']
  %s0 = inlined_call_operand.vmem [shape: bf16[392,108], index: 0, kind: input, shape index: {}]
  %s1 = inlined_call_operand.vmem [shape: bf16[108,128], index: 1, kind: input, shape index: {}]
  %s2 = inlined_call_operand.vmem [shape: f32[1,128], index: 2, kind: input, shape index: {}]
  %s3 = inlined_call_operand.vmem [shape: bf16[392,128], index: 3, kind: output, shape index: {}]
  %s4 = sld [smem:[#allocation0]]
  $region22: #{moon_lenet_forward.3} parent=0
    _
  %s6 = ssub.s32 1, %s4
  %s7 = scalar_select 0, %s6, %s4
  // Predicated region
  $region2: #{moon_lenet_forward.3} parent=0 // pred_check
    _
  $region3: #{moon_lenet_forward.3} parent=0 // pred_check_branch
    %9 = sbr.rel (0) target = $region5
  $region4: #{moon_lenet_forward.3} parent=0 // pred_region
    _
  $region5: #{moon_lenet_forward.3} parent=0 // pred_fallthru
    _
  // Predicated region
  $region6: #{moon_lenet_forward.3} parent=0 // pred_check
    _
  $region7: #{moon_lenet_forward.3} parent=0 // pred_check_branch
    %11 = sbr.rel (0) target = $region9
  $region8: #{moon_lenet_forward.3} parent=0 // pred_region
    _
  $region9: #{moon_lenet_forward.3} parent=0 // pred_fallthru
    _
  // Predicated region
  $region10: #{moon_lenet_forward.3} parent=0 // pred_check
    _
  $region11: #{moon_lenet_forward.3} parent=0 // pred_check_branch
    %13 = sbr.rel (0) target = $region13
  $region12: #{moon_lenet_forward.3} parent=0 // pred_region
    _
  $region13: #{moon_lenet_forward.3} parent=0 // pred_fallthru
    _
  %v15 = vld [vmem:[%s0] sm:$0xf]
  %v16 = vld [vmem:[%s0 + $0x4] sm:$0xf]
  %v17 = vld [vmem:[%s0 + $0x8] sm:$0xf]
  %v18 = vld [vmem:[%s0 + $0xc] sm:$0xf]
  %v19 = vld [vmem:[%s0 + $0x10] sm:$0xf]
  %v20 = vld [vmem:[%s0 + $0x14] sm:$0xf]
  %v21 = vld [vmem:[%s0 + $0x18] sm:$0xf]
  %v22 = vld [vmem:[%s0 + $0x1c] sm:$0xf]
  %v23 = vld [vmem:[%s0 + $0x20] sm:$0xf]
  %v24 = vld [vmem:[%s0 + $0x24] sm:$0xf]
  %v25 = vld [vmem:[%s0 + $0x28] sm:$0xf]
  %v26 = vld [vmem:[%s0 + $0x2c] sm:$0xf]
  %v27 = vld [vmem:[%s0 + $0x30] sm:$0xf]
  %v28 = vld [vmem:[%s0 + $0x34] sm:$0xf]
  %v29 = vld [vmem:[%s0 + $0x38] sm:$0xf]
  %v30 = vld [vmem:[%s0 + $0x3c] sm:$0xf]
  %v31 = vld [vmem:[%s0 + $0x40] sm:$0xf]
  %v32 = vld [vmem:[%s0 + $0x44] sm:$0xf]
  %v33 = vld [vmem:[%s0 + $0x48] sm:$0xf]
  %v34 = vld [vmem:[%s0 + $0x4c] sm:$0xf]
  %v35 = vld [vmem:[%s0 + $0x50] sm:$0xf]
  %v36 = vld [vmem:[%s0 + $0x54] sm:$0xf]
  %v37 = vld [vmem:[%s0 + $0x58] sm:$0xf]
  %v38 = vld [vmem:[%s0 + $0x5c] sm:$0xf]
  %v39 = vld [vmem:[%s0 + $0x60] sm:$0xf]
  %v40 = vld [vmem:[%s0 + $0x64] sm:$0xf]
  %v41 = vld [vmem:[%s0 + $0x68] sm:$0xf]
  %v42 = vld [vmem:[%s0 + $0x6c] sm:$0xf]
  %v43 = vld [vmem:[%s0 + $0x70] sm:$0xf]
  %v44 = vld [vmem:[%s0 + $0x74] sm:$0xf]
  %v45 = vld [vmem:[%s0 + $0x78] sm:$0xf]
  %v46 = vld [vmem:[%s0 + $0x7c] sm:$0xf]
  %v47 = vld [vmem:[%s0 + $0x80] sm:$0xf]
  %v48 = vld [vmem:[%s0 + $0x84] sm:$0xf]
  %v49 = vld [vmem:[%s0 + $0x88] sm:$0xf]
  %v50 = vld [vmem:[%s0 + $0x8c] sm:$0xf]
  %v51 = vld [vmem:[%s0 + $0x90] sm:$0xf]
  %v52 = vld [vmem:[%s0 + $0x94] sm:$0xf]
  %v53 = vld [vmem:[%s0 + $0x98] sm:$0xf]
  %v54 = vld [vmem:[%s0 + $0x9c] sm:$0xf]
  %v55 = vld [vmem:[%s0 + $0xa0] sm:$0xf]
  %v56 = vld [vmem:[%s0 + $0xa4] sm:$0xf]
  %v57 = vld [vmem:[%s0 + $0xa8] sm:$0xf]
  %v58 = vld [vmem:[%s0 + $0xac] sm:$0xf]
  %v59 = vld [vmem:[%s0 + $0xb0] sm:$0xf]
  %v60 = vld [vmem:[%s0 + $0xb4] sm:$0xf]
  %v61 = vld [vmem:[%s0 + $0xb8] sm:$0xf]
  %v62 = vld [vmem:[%s0 + $0xbc] sm:$0xf]
  %v63 = vld [vmem:[%s0 + $0xc0] sm:$0xf]
  %v64 = vld [vmem:[%s1] sm:$0xf]
  %v65 = vld [vmem:[%s1 + $0x4] sm:$0xf]
  %v66 = vld [vmem:[%s1 + $0x8] sm:$0xf]
  %v67 = vld [vmem:[%s1 + $0xc] sm:$0xf]
  %v68 = vld [vmem:[%s1 + $0x10] sm:$0xf]
  %v69 = vld [vmem:[%s1 + $0x14] sm:$0xf]
  %v70 = vld [vmem:[%s1 + $0x18] sm:$0xf]
  %v71 = vld [vmem:[%s1 + $0x1c] sm:$0xf]
  %v72 = vld [vmem:[%s1 + $0x20] sm:$0xf]
  %v73 = vld [vmem:[%s1 + $0x24] sm:$0xf]
  %v74 = vld [vmem:[%s1 + $0x28] sm:$0xf]
  %v75 = vld [vmem:[%s1 + $0x2c] sm:$0xf]
  %v76 = vld [vmem:[%s1 + $0x30] sm:$0xf]
  %v77 = vld [vmem:[%s1 + $0x34] sm:$0x3]
  %v78 = vld [vmem:[%s2] sm:$0x1]
  %v80 = vlaneseq
  %v81 = vshrl.u32 %v80, 7
  %v82 = vsub.s32 0, %v81
  %v83 = vrot.slane %v78, %v82
  %v134 = vunpack.c.l.b16 %v15
  %v135 = vunpack.c.l.b16 %v16
  %v136 = vunpack.c.l.b16 %v17
  %v137 = vunpack.c.l.b16 %v18
  %v138 = vunpack.c.l.b16 %v19
  %v139 = vunpack.c.l.b16 %v20
  %v140 = vunpack.c.l.b16 %v21
  %v141 = vunpack.c.l.b16 %v22
  %v142 = vunpack.c.l.b16 %v23
  %v143 = vunpack.c.l.b16 %v24
  %v144 = vunpack.c.l.b16 %v25
  %v145 = vunpack.c.l.b16 %v26
  %v146 = vunpack.c.l.b16 %v27
  %v147 = vunpack.c.l.b16 %v28
  %v148 = vunpack.c.l.b16 %v29
  %v149 = vunpack.c.l.b16 %v30
  %v150 = vunpack.c.l.b16 %v31
  %v151 = vunpack.c.l.b16 %v32
  %v152 = vunpack.c.l.b16 %v33
  %v153 = vunpack.c.l.b16 %v34
  %v154 = vunpack.c.l.b16 %v35
  %v155 = vunpack.c.l.b16 %v36
  %v156 = vunpack.c.l.b16 %v37
  %v157 = vunpack.c.l.b16 %v38
  %v158 = vunpack.c.l.b16 %v39
  %v159 = vunpack.c.l.b16 %v40
  %v160 = vunpack.c.l.b16 %v41
  %v161 = vunpack.c.l.b16 %v42
  %v162 = vunpack.c.l.b16 %v43
  %v163 = vunpack.c.l.b16 %v44
  %v164 = vunpack.c.l.b16 %v45
  %v165 = vunpack.c.l.b16 %v46
  %v166 = vunpack.c.l.b16 %v47
  %v167 = vunpack.c.l.b16 %v48
  %v168 = vunpack.c.l.b16 %v49
  %v169 = vunpack.c.l.b16 %v50
  %v170 = vunpack.c.l.b16 %v51
  %v171 = vunpack.c.l.b16 %v52
  %v172 = vunpack.c.l.b16 %v53
  %v173 = vunpack.c.l.b16 %v54
  %v174 = vunpack.c.l.b16 %v55
  %v175 = vunpack.c.l.b16 %v56
  %v176 = vunpack.c.l.b16 %v57
  %v177 = vunpack.c.l.b16 %v58
  %v178 = vunpack.c.l.b16 %v59
  %v179 = vunpack.c.l.b16 %v60
  %v180 = vunpack.c.l.b16 %v61
  %v181 = vunpack.c.l.b16 %v62
  %v182 = vunpack.c.l.b16 %v63
  %v183 = vpack.c.b16 %v135, %v134
  %v184 = vpack.c.b16 %v137, %v136
  %v185 = vpack.c.b16 %v139, %v138
  %v186 = vpack.c.b16 %v141, %v140
  %v187 = vpack.c.b16 %v143, %v142
  %v188 = vpack.c.b16 %v145, %v144
  %v189 = vpack.c.b16 %v147, %v146
  %v190 = vpack.c.b16 %v149, %v148
  %v191 = vpack.c.b16 %v151, %v150
  %v192 = vpack.c.b16 %v153, %v152
  %v193 = vpack.c.b16 %v155, %v154
  %v194 = vpack.c.b16 %v157, %v156
  %v195 = vpack.c.b16 %v159, %v158
  %v196 = vpack.c.b16 %v161, %v160
  %v197 = vpack.c.b16 %v163, %v162
  %v198 = vpack.c.b16 %v165, %v164
  %v199 = vpack.c.b16 %v167, %v166
  %v200 = vpack.c.b16 %v169, %v168
  %v201 = vpack.c.b16 %v171, %v170
  %v202 = vpack.c.b16 %v173, %v172
  %v203 = vpack.c.b16 %v175, %v174
  %v204 = vpack.c.b16 %v177, %v176
  %v205 = vpack.c.b16 %v179, %v178
  %v206 = vpack.c.b16 %v181, %v180
  %v207 = vpack.c.b16 %v182, %v182
  %v222 = vunpack.c.l.b16 %v64
  %v223 = vunpack.c.l.b16 %v65
  %v224 = vunpack.c.l.b16 %v66
  %v225 = vunpack.c.l.b16 %v67
  %v226 = vunpack.c.l.b16 %v68
  %v227 = vunpack.c.l.b16 %v69
  %v228 = vunpack.c.l.b16 %v70
  %v229 = vunpack.c.l.b16 %v71
  %v230 = vunpack.c.l.b16 %v72
  %v231 = vunpack.c.l.b16 %v73
  %v232 = vunpack.c.l.b16 %v74
  %v233 = vunpack.c.l.b16 %v75
  %v234 = vunpack.c.l.b16 %v76
  %v235 = vunpack.c.l.b16 %v77
  %v236 = vpack.c.b16 %v223, %v222
  %v237 = vpack.c.b16 %v225, %v224
  %v238 = vpack.c.b16 %v227, %v226
  %v239 = vpack.c.b16 %v229, %v228
  %v240 = vpack.c.b16 %v231, %v230
  %v241 = vpack.c.b16 %v233, %v232
  %v242 = vpack.c.b16 %v235, %v234
  %vm249 = vcmask 883712
  %v251 = vsel %vm249, %v183, 0
  %v254 = vsel %vm249, %v184, 0
  %v257 = vsel %vm249, %v185, 0
  %v260 = vsel %vm249, %v186, 0
  %v263 = vsel %vm249, %v187, 0
  %v266 = vsel %vm249, %v188, 0
  %v269 = vsel %vm249, %v189, 0
  %v272 = vsel %vm249, %v190, 0
  %v275 = vsel %vm249, %v191, 0
  %v278 = vsel %vm249, %v192, 0
  %v281 = vsel %vm249, %v193, 0
  %v284 = vsel %vm249, %v194, 0
  %v287 = vsel %vm249, %v195, 0
  %v290 = vsel %vm249, %v196, 0
  %v293 = vsel %vm249, %v197, 0
  %v296 = vsel %vm249, %v198, 0
  %v299 = vsel %vm249, %v199, 0
  %v302 = vsel %vm249, %v200, 0
  %v305 = vsel %vm249, %v201, 0
  %v308 = vsel %vm249, %v202, 0
  %v311 = vsel %vm249, %v203, 0
  %v314 = vsel %vm249, %v204, 0
  %v317 = vsel %vm249, %v205, 0
  %v320 = vsel %vm249, %v206, 0
  %v323 = vsel %vm249, %v207, 0
  %vm325 = vcmask 1045504
  %v327 = vsel %vm325, %v242, 0
  %329 = vmatprep.subr.bf16.mxu0 0
  %330 = vmatpush1.bf16.msra.mxu0 %v236
  %331 = vmatprep.subr.bf16.mxu0 0
  %332 = vmatpush1.bf16.msra.mxu0 %v237
  %333 = vmatprep.subr.bf16.mxu0 0
  %334 = vmatpush1.bf16.msra.mxu0 %v238
  %335 = vmatprep.subr.bf16.mxu0 0
  %336 = vmatpush1.bf16.msra.mxu0 %v239
  %337 = vmatprep.subr.bf16.mxu0 0
  %338 = vmatpush1.bf16.msra.mxu0 %v240
  %339 = vmatprep.subr.bf16.mxu0 0
  %340 = vmatpush1.bf16.msra.mxu0 %v241
  %341 = vmatprep.subr.bf16.mxu0 0
  %342 = vmatpush1.bf16.msra.mxu0 %v327
  %343 = vmatprep.subr.bf16.mxu0 0
  %344 = vmatpush1.bf16.msra.mxu0 0
  %345 = vmatprep.subr.bf16.mxu0 0
  %346 = vmatpush1.bf16.msra.mxu0 0
  %347 = vmatprep.subr.bf16.mxu0 0
  %348 = vmatpush1.bf16.msra.mxu0 0
  %349 = vmatprep.subr.bf16.mxu0 0
  %350 = vmatpush1.bf16.msra.mxu0 0
  %351 = vmatprep.subr.bf16.mxu0 0
  %352 = vmatpush1.bf16.msra.mxu0 0
  %353 = vmatprep.subr.bf16.mxu0 0
  %354 = vmatpush1.bf16.msra.mxu0 0
  %355 = vmatprep.subr.bf16.mxu0 0
  %356 = vmatpush1.bf16.msra.mxu0 0
  %357 = vmatprep.subr.bf16.mxu0 0
  %358 = vmatpush1.bf16.msra.mxu0 0
  %359 = vmatprep.subr.bf16.mxu0 0
  %360 = vmatpush1.bf16.msra.mxu0 0
  %361 = vmatprep.mubr.bf16.mxu0 0
  %362 = vmatmul.mubr.bf16.gmra.mrb[0].mxu0 %v251
  %v363 = vpop.f32.mrb[0].mxu0
  %v364 = vadd.f32 %v83, %v363
  %v365 = vpop.f32.mrb[0].mxu0
  %v366 = vpop.f32.mrb[0].mxu0
  %v367 = vadd.f32 %v83, %v366
  %v368 = vpop.f32.mrb[0].mxu0
  %369 = vmatprep.mubr.bf16.mxu0 0
  %370 = vmatmul.mubr.bf16.gmra.mrb[0].mxu0 %v254
  %v371 = vpop.f32.mrb[0].mxu0
  %v372 = vadd.f32 %v83, %v371
  %v373 = vpop.f32.mrb[0].mxu0
  %v374 = vpop.f32.mrb[0].mxu0
  %v375 = vadd.f32 %v83, %v374
  %v376 = vpop.f32.mrb[0].mxu0
  %377 = vmatprep.mubr.bf16.mxu0 0
  %378 = vmatmul.mubr.bf16.gmra.mrb[0].mxu0 %v257
  %v379 = vpop.f32.mrb[0].mxu0
  %v380 = vadd.f32 %v83, %v379
  %v381 = vpop.f32.mrb[0].mxu0
  %v382 = vpop.f32.mrb[0].mxu0
  %v383 = vadd.f32 %v83, %v382
  %v384 = vpop.f32.mrb[0].mxu0
  %385 = vmatprep.mubr.bf16.mxu0 0
  %386 = vmatmul.mubr.bf16.gmra.mrb[0].mxu0 %v260
  %v387 = vpop.f32.mrb[0].mxu0
  %v388 = vadd.f32 %v83, %v387
  %v389 = vpop.f32.mrb[0].mxu0
  %v390 = vpop.f32.mrb[0].mxu0
  %v391 = vadd.f32 %v83, %v390
  %v392 = vpop.f32.mrb[0].mxu0
  %393 = vmatprep.mubr.bf16.mxu0 0
  %394 = vmatmul.mubr.bf16.gmra.mrb[0].mxu0 %v263
  %v395 = vpop.f32.mrb[0].mxu0
  %v396 = vadd.f32 %v83, %v395
  %v397 = vpop.f32.mrb[0].mxu0
  %v398 = vpop.f32.mrb[0].mxu0
  %v399 = vadd.f32 %v83, %v398
  %v400 = vpop.f32.mrb[0].mxu0
  %401 = vmatprep.mubr.bf16.mxu0 0
  %402 = vmatmul.mubr.bf16.gmra.mrb[0].mxu0 %v266
  %v403 = vpop.f32.mrb[0].mxu0
  %v404 = vadd.f32 %v83, %v403
  %v405 = vpop.f32.mrb[0].mxu0
  %v406 = vpop.f32.mrb[0].mxu0
  %v407 = vadd.f32 %v83, %v406
  %v408 = vpop.f32.mrb[0].mxu0
  %409 = vmatprep.mubr.bf16.mxu0 0
  %410 = vmatmul.mubr.bf16.gmra.mrb[0].mxu0 %v269
  %v411 = vpop.f32.mrb[0].mxu0
  %v412 = vadd.f32 %v83, %v411
  %v413 = vpop.f32.mrb[0].mxu0
  %v414 = vpop.f32.mrb[0].mxu0
  %v415 = vadd.f32 %v83, %v414
  %v416 = vpop.f32.mrb[0].mxu0
  %417 = vmatprep.mubr.bf16.mxu0 0
  %418 = vmatmul.mubr.bf16.gmra.mrb[0].mxu0 %v272
  %v419 = vpop.f32.mrb[0].mxu0
  %v420 = vadd.f32 %v83, %v419
  %v421 = vpop.f32.mrb[0].mxu0
  %v422 = vpop.f32.mrb[0].mxu0
  %v423 = vadd.f32 %v83, %v422
  %v424 = vpop.f32.mrb[0].mxu0
  %425 = vmatprep.mubr.bf16.mxu0 0
  %426 = vmatmul.mubr.bf16.gmra.mrb[0].mxu0 %v275
  %v427 = vpop.f32.mrb[0].mxu0
  %v428 = vadd.f32 %v83, %v427
  %v429 = vpop.f32.mrb[0].mxu0
  %v430 = vpop.f32.mrb[0].mxu0
  %v431 = vadd.f32 %v83, %v430
  %v432 = vpop.f32.mrb[0].mxu0
  %433 = vmatprep.mubr.bf16.mxu0 0
  %434 = vmatmul.mubr.bf16.gmra.mrb[0].mxu0 %v278
  %v435 = vpop.f32.mrb[0].mxu0
  %v436 = vadd.f32 %v83, %v435
  %v437 = vpop.f32.mrb[0].mxu0
  %v438 = vpop.f32.mrb[0].mxu0
  %v439 = vadd.f32 %v83, %v438
  %v440 = vpop.f32.mrb[0].mxu0
  %441 = vmatprep.mubr.bf16.mxu0 0
  %442 = vmatmul.mubr.bf16.gmra.mrb[0].mxu0 %v281
  %v443 = vpop.f32.mrb[0].mxu0
  %v444 = vadd.f32 %v83, %v443
  %v445 = vpop.f32.mrb[0].mxu0
  %v446 = vpop.f32.mrb[0].mxu0
  %v447 = vadd.f32 %v83, %v446
  %v448 = vpop.f32.mrb[0].mxu0
  %449 = vmatprep.mubr.bf16.mxu0 0
  %450 = vmatmul.mubr.bf16.gmra.mrb[0].mxu0 %v284
  %v451 = vpop.f32.mrb[0].mxu0
  %v452 = vadd.f32 %v83, %v451
  %v453 = vpop.f32.mrb[0].mxu0
  %v454 = vpop.f32.mrb[0].mxu0
  %v455 = vadd.f32 %v83, %v454
  %v456 = vpop.f32.mrb[0].mxu0
  %457 = vmatprep.mubr.bf16.mxu0 0
  %458 = vmatmul.mubr.bf16.gmra.mrb[0].mxu0 %v287
  %v459 = vpop.f32.mrb[0].mxu0
  %v460 = vadd.f32 %v83, %v459
  %v461 = vpop.f32.mrb[0].mxu0
  %v462 = vpop.f32.mrb[0].mxu0
  %v463 = vadd.f32 %v83, %v462
  %v464 = vpop.f32.mrb[0].mxu0
  %465 = vmatprep.mubr.bf16.mxu0 0
  %466 = vmatmul.mubr.bf16.gmra.mrb[0].mxu0 %v290
  %v467 = vpop.f32.mrb[0].mxu0
  %v468 = vadd.f32 %v83, %v467
  %v469 = vpop.f32.mrb[0].mxu0
  %v470 = vpop.f32.mrb[0].mxu0
  %v471 = vadd.f32 %v83, %v470
  %v472 = vpop.f32.mrb[0].mxu0
  %473 = vmatprep.mubr.bf16.mxu0 0
  %474 = vmatmul.mubr.bf16.gmra.mrb[0].mxu0 %v293
  %v475 = vpop.f32.mrb[0].mxu0
  %v476 = vadd.f32 %v83, %v475
  %v477 = vpop.f32.mrb[0].mxu0
  %v478 = vpop.f32.mrb[0].mxu0
  %v479 = vadd.f32 %v83, %v478
  %v480 = vpop.f32.mrb[0].mxu0
  %481 = vmatprep.mubr.bf16.mxu0 0
  %482 = vmatmul.mubr.bf16.gmra.mrb[0].mxu0 %v296
  %v483 = vpop.f32.mrb[0].mxu0
  %v484 = vadd.f32 %v83, %v483
  %v485 = vpop.f32.mrb[0].mxu0
  %v486 = vpop.f32.mrb[0].mxu0
  %v487 = vadd.f32 %v83, %v486
  %v488 = vpop.f32.mrb[0].mxu0
  %489 = vmatprep.mubr.bf16.mxu0 0
  %490 = vmatmul.mubr.bf16.gmra.mrb[0].mxu0 %v299
  %v491 = vpop.f32.mrb[0].mxu0
  %v492 = vadd.f32 %v83, %v491
  %v493 = vpop.f32.mrb[0].mxu0
  %v494 = vpop.f32.mrb[0].mxu0
  %v495 = vadd.f32 %v83, %v494
  %v496 = vpop.f32.mrb[0].mxu0
  %497 = vmatprep.mubr.bf16.mxu0 0
  %498 = vmatmul.mubr.bf16.gmra.mrb[0].mxu0 %v302
  %v499 = vpop.f32.mrb[0].mxu0
  %v500 = vadd.f32 %v83, %v499
  %v501 = vpop.f32.mrb[0].mxu0
  %v502 = vpop.f32.mrb[0].mxu0
  %v503 = vadd.f32 %v83, %v502
  %v504 = vpop.f32.mrb[0].mxu0
  %505 = vmatprep.mubr.bf16.mxu0 0
  %506 = vmatmul.mubr.bf16.gmra.mrb[0].mxu0 %v305
  %v507 = vpop.f32.mrb[0].mxu0
  %v508 = vadd.f32 %v83, %v507
  %v509 = vpop.f32.mrb[0].mxu0
  %v510 = vpop.f32.mrb[0].mxu0
  %v511 = vadd.f32 %v83, %v510
  %v512 = vpop.f32.mrb[0].mxu0
  %513 = vmatprep.mubr.bf16.mxu0 0
  %514 = vmatmul.mubr.bf16.gmra.mrb[0].mxu0 %v308
  %v515 = vpop.f32.mrb[0].mxu0
  %v516 = vadd.f32 %v83, %v515
  %v517 = vpop.f32.mrb[0].mxu0
  %v518 = vpop.f32.mrb[0].mxu0
  %v519 = vadd.f32 %v83, %v518
  %v520 = vpop.f32.mrb[0].mxu0
  %521 = vmatprep.mubr.bf16.mxu0 0
  %522 = vmatmul.mubr.bf16.gmra.mrb[0].mxu0 %v311
  %v523 = vpop.f32.mrb[0].mxu0
  %v524 = vadd.f32 %v83, %v523
  %v525 = vpop.f32.mrb[0].mxu0
  %v526 = vpop.f32.mrb[0].mxu0
  %v527 = vadd.f32 %v83, %v526
  %v528 = vpop.f32.mrb[0].mxu0
  %529 = vmatprep.mubr.bf16.mxu0 0
  %530 = vmatmul.mubr.bf16.gmra.mrb[0].mxu0 %v314
  %v531 = vpop.f32.mrb[0].mxu0
  %v532 = vadd.f32 %v83, %v531
  %v533 = vpop.f32.mrb[0].mxu0
  %v534 = vpop.f32.mrb[0].mxu0
  %v535 = vadd.f32 %v83, %v534
  %v536 = vpop.f32.mrb[0].mxu0
  %537 = vmatprep.mubr.bf16.mxu0 0
  %538 = vmatmul.mubr.bf16.gmra.mrb[0].mxu0 %v317
  %v539 = vpop.f32.mrb[0].mxu0
  %v540 = vadd.f32 %v83, %v539
  %v541 = vpop.f32.mrb[0].mxu0
  %v542 = vpop.f32.mrb[0].mxu0
  %v543 = vadd.f32 %v83, %v542
  %v544 = vpop.f32.mrb[0].mxu0
  %545 = vmatprep.mubr.bf16.mxu0 0
  %546 = vmatmul.mubr.bf16.gmra.mrb[0].mxu0 %v320
  %v547 = vpop.f32.mrb[0].mxu0
  %v548 = vadd.f32 %v83, %v547
  %v549 = vpop.f32.mrb[0].mxu0
  %v550 = vpop.f32.mrb[0].mxu0
  %v551 = vadd.f32 %v83, %v550
  %v552 = vpop.f32.mrb[0].mxu0
  %553 = vmatprep.mubr.bf16.mxu0 0
  %554 = vmatmul.mubr.bf16.gmra.mrb[0].mxu0 %v323
  %v555 = vpop.f32.mrb[0].mxu0
  %v556 = vadd.f32 %v83, %v555
  %v557 = vpop.f32.mrb[0].mxu0
  %v558 = vpop.f32.mrb[0].mxu0
  %v559 = vpop.f32.mrb[0].mxu0
  %560 = vdwg.mxu0
  %v561 = vpack.c.bf16 %v367, %v364
  %v562 = vpack.c.bf16 %v375, %v372
  %v563 = vpack.c.bf16 %v383, %v380
  %v564 = vpack.c.bf16 %v391, %v388
  %v565 = vpack.c.bf16 %v399, %v396
  %v566 = vpack.c.bf16 %v407, %v404
  %v567 = vpack.c.bf16 %v415, %v412
  %v568 = vpack.c.bf16 %v423, %v420
  %v569 = vpack.c.bf16 %v431, %v428
  %v570 = vpack.c.bf16 %v439, %v436
  %v571 = vpack.c.bf16 %v447, %v444
  %v572 = vpack.c.bf16 %v455, %v452
  %v573 = vpack.c.bf16 %v463, %v460
  %v574 = vpack.c.bf16 %v471, %v468
  %v575 = vpack.c.bf16 %v479, %v476
  %v576 = vpack.c.bf16 %v487, %v484
  %v577 = vpack.c.bf16 %v495, %v492
  %v578 = vpack.c.bf16 %v503, %v500
  %v579 = vpack.c.bf16 %v511, %v508
  %v580 = vpack.c.bf16 %v519, %v516
  %v581 = vpack.c.bf16 %v527, %v524
  %v582 = vpack.c.bf16 %v535, %v532
  %v583 = vpack.c.bf16 %v543, %v540
  %v584 = vpack.c.bf16 %v551, %v548
  %v585 = vpack.c.bf16 %v556, %v556
  %v611 = vunpack.c.l.b16 %v561
  %v612 = vunpack.c.h.b16 %v561
  %v613 = vunpack.c.l.b16 %v562
  %v614 = vunpack.c.h.b16 %v562
  %v615 = vunpack.c.l.b16 %v563
  %v616 = vunpack.c.h.b16 %v563
  %v617 = vunpack.c.l.b16 %v564
  %v618 = vunpack.c.h.b16 %v564
  %v619 = vunpack.c.l.b16 %v565
  %v620 = vunpack.c.h.b16 %v565
  %v621 = vunpack.c.l.b16 %v566
  %v622 = vunpack.c.h.b16 %v566
  %v623 = vunpack.c.l.b16 %v567
  %v624 = vunpack.c.h.b16 %v567
  %v625 = vunpack.c.l.b16 %v568
  %v626 = vunpack.c.h.b16 %v568
  %v627 = vunpack.c.l.b16 %v569
  %v628 = vunpack.c.h.b16 %v569
  %v629 = vunpack.c.l.b16 %v570
  %v630 = vunpack.c.h.b16 %v570
  %v631 = vunpack.c.l.b16 %v571
  %v632 = vunpack.c.h.b16 %v571
  %v633 = vunpack.c.l.b16 %v572
  %v634 = vunpack.c.h.b16 %v572
  %v635 = vunpack.c.l.b16 %v573
  %v636 = vunpack.c.h.b16 %v573
  %v637 = vunpack.c.l.b16 %v574
  %v638 = vunpack.c.h.b16 %v574
  %v639 = vunpack.c.l.b16 %v575
  %v640 = vunpack.c.h.b16 %v575
  %v641 = vunpack.c.l.b16 %v576
  %v642 = vunpack.c.h.b16 %v576
  %v643 = vunpack.c.l.b16 %v577
  %v644 = vunpack.c.h.b16 %v577
  %v645 = vunpack.c.l.b16 %v578
  %v646 = vunpack.c.h.b16 %v578
  %v647 = vunpack.c.l.b16 %v579
  %v648 = vunpack.c.h.b16 %v579
  %v649 = vunpack.c.l.b16 %v580
  %v650 = vunpack.c.h.b16 %v580
  %v651 = vunpack.c.l.b16 %v581
  %v652 = vunpack.c.h.b16 %v581
  %v653 = vunpack.c.l.b16 %v582
  %v654 = vunpack.c.h.b16 %v582
  %v655 = vunpack.c.l.b16 %v583
  %v656 = vunpack.c.h.b16 %v583
  %v657 = vunpack.c.l.b16 %v584
  %v658 = vunpack.c.h.b16 %v584
  %v659 = vunpack.c.l.b16 %v585
  %v660 = vpack.c.b16 %v611, %v611
  %v661 = vpack.c.b16 %v612, %v612
  %v662 = vpack.c.b16 %v613, %v613
  %v663 = vpack.c.b16 %v614, %v614
  %v664 = vpack.c.b16 %v615, %v615
  %v665 = vpack.c.b16 %v616, %v616
  %v666 = vpack.c.b16 %v617, %v617
  %v667 = vpack.c.b16 %v618, %v618
  %v668 = vpack.c.b16 %v619, %v619
  %v669 = vpack.c.b16 %v620, %v620
  %v670 = vpack.c.b16 %v621, %v621
  %v671 = vpack.c.b16 %v622, %v622
  %v672 = vpack.c.b16 %v623, %v623
  %v673 = vpack.c.b16 %v624, %v624
  %v674 = vpack.c.b16 %v625, %v625
  %v675 = vpack.c.b16 %v626, %v626
  %v676 = vpack.c.b16 %v627, %v627
  %v677 = vpack.c.b16 %v628, %v628
  %v678 = vpack.c.b16 %v629, %v629
  %v679 = vpack.c.b16 %v630, %v630
  %v680 = vpack.c.b16 %v631, %v631
  %v681 = vpack.c.b16 %v632, %v632
  %v682 = vpack.c.b16 %v633, %v633
  %v683 = vpack.c.b16 %v634, %v634
  %v684 = vpack.c.b16 %v635, %v635
  %v685 = vpack.c.b16 %v636, %v636
  %v686 = vpack.c.b16 %v637, %v637
  %v687 = vpack.c.b16 %v638, %v638
  %v688 = vpack.c.b16 %v639, %v639
  %v689 = vpack.c.b16 %v640, %v640
  %v690 = vpack.c.b16 %v641, %v641
  %v691 = vpack.c.b16 %v642, %v642
  %v692 = vpack.c.b16 %v643, %v643
  %v693 = vpack.c.b16 %v644, %v644
  %v694 = vpack.c.b16 %v645, %v645
  %v695 = vpack.c.b16 %v646, %v646
  %v696 = vpack.c.b16 %v647, %v647
  %v697 = vpack.c.b16 %v648, %v648
  %v698 = vpack.c.b16 %v649, %v649
  %v699 = vpack.c.b16 %v650, %v650
  %v700 = vpack.c.b16 %v651, %v651
  %v701 = vpack.c.b16 %v652, %v652
  %v702 = vpack.c.b16 %v653, %v653
  %v703 = vpack.c.b16 %v654, %v654
  %v704 = vpack.c.b16 %v655, %v655
  %v705 = vpack.c.b16 %v656, %v656
  %v706 = vpack.c.b16 %v657, %v657
  %v707 = vpack.c.b16 %v658, %v658
  %v708 = vpack.c.b16 %v659, %v659
  %758 = vst [vmem:[%s3] sm:$0xf] %v660
  %759 = vst [vmem:[%s3 + $0x4] sm:$0xf] %v661
  %760 = vst [vmem:[%s3 + $0x8] sm:$0xf] %v662
  %761 = vst [vmem:[%s3 + $0xc] sm:$0xf] %v663
  %762 = vst [vmem:[%s3 + $0x10] sm:$0xf] %v664
  %763 = vst [vmem:[%s3 + $0x14] sm:$0xf] %v665
  %764 = vst [vmem:[%s3 + $0x18] sm:$0xf] %v666
  %765 = vst [vmem:[%s3 + $0x1c] sm:$0xf] %v667
  %766 = vst [vmem:[%s3 + $0x20] sm:$0xf] %v668
  %767 = vst [vmem:[%s3 + $0x24] sm:$0xf] %v669
  %768 = vst [vmem:[%s3 + $0x28] sm:$0xf] %v670
  %769 = vst [vmem:[%s3 + $0x2c] sm:$0xf] %v671
  %770 = vst [vmem:[%s3 + $0x30] sm:$0xf] %v672
  %771 = vst [vmem:[%s3 + $0x34] sm:$0xf] %v673
  %772 = vst [vmem:[%s3 + $0x38] sm:$0xf] %v674
  %773 = vst [vmem:[%s3 + $0x3c] sm:$0xf] %v675
  %774 = vst [vmem:[%s3 + $0x40] sm:$0xf] %v676
  %775 = vst [vmem:[%s3 + $0x44] sm:$0xf] %v677
  %776 = vst [vmem:[%s3 + $0x48] sm:$0xf] %v678
  %777 = vst [vmem:[%s3 + $0x4c] sm:$0xf] %v679
  %778 = vst [vmem:[%s3 + $0x50] sm:$0xf] %v680
  %779 = vst [vmem:[%s3 + $0x54] sm:$0xf] %v681
  %780 = vst [vmem:[%s3 + $0x58] sm:$0xf] %v682
  %781 = vst [vmem:[%s3 + $0x5c] sm:$0xf] %v683
  %782 = vst [vmem:[%s3 + $0x60] sm:$0xf] %v684
  %783 = vst [vmem:[%s3 + $0x64] sm:$0xf] %v685
  %784 = vst [vmem:[%s3 + $0x68] sm:$0xf] %v686
  %785 = vst [vmem:[%s3 + $0x6c] sm:$0xf] %v687
  %786 = vst [vmem:[%s3 + $0x70] sm:$0xf] %v688
  %787 = vst [vmem:[%s3 + $0x74] sm:$0xf] %v689
  %788 = vst [vmem:[%s3 + $0x78] sm:$0xf] %v690
  %789 = vst [vmem:[%s3 + $0x7c] sm:$0xf] %v691
  %790 = vst [vmem:[%s3 + $0x80] sm:$0xf] %v692
  %791 = vst [vmem:[%s3 + $0x84] sm:$0xf] %v693
  %792 = vst [vmem:[%s3 + $0x88] sm:$0xf] %v694
  %793 = vst [vmem:[%s3 + $0x8c] sm:$0xf] %v695
  %794 = vst [vmem:[%s3 + $0x90] sm:$0xf] %v696
  %795 = vst [vmem:[%s3 + $0x94] sm:$0xf] %v697
  %796 = vst [vmem:[%s3 + $0x98] sm:$0xf] %v698
  %797 = vst [vmem:[%s3 + $0x9c] sm:$0xf] %v699
  %798 = vst [vmem:[%s3 + $0xa0] sm:$0xf] %v700
  %799 = vst [vmem:[%s3 + $0xa4] sm:$0xf] %v701
  %800 = vst [vmem:[%s3 + $0xa8] sm:$0xf] %v702
  %801 = vst [vmem:[%s3 + $0xac] sm:$0xf] %v703
  %802 = vst [vmem:[%s3 + $0xb0] sm:$0xf] %v704
  %803 = vst [vmem:[%s3 + $0xb4] sm:$0xf] %v705
  %804 = vst [vmem:[%s3 + $0xb8] sm:$0xf] %v706
  %805 = vst [vmem:[%s3 + $0xbc] sm:$0xf] %v707
  %806 = vst [vmem:[%s3 + $0xc0] sm:$0xf] %v708
  // Predicated region
  $region14: #{moon_lenet_forward.3} parent=0 // pred_check
    _
  $region15: #{moon_lenet_forward.3} parent=0 // pred_check_branch
    %808 = sbr.rel (0) target = $region17
  $region16: #{moon_lenet_forward.3} parent=0 // pred_region
    _
  $region17: #{moon_lenet_forward.3} parent=0 // pred_fallthru
    _
  // Predicated region
  $region18: #{moon_lenet_forward.3} parent=0 // pred_check
    _
  $region19: #{moon_lenet_forward.3} parent=0 // pred_check_branch
    %810 = sbr.rel (0) target = $region21
  $region20: #{moon_lenet_forward.3} parent=0 // pred_region
    _
  $region21: #{moon_lenet_forward.3} parent=0 // pred_fallthru
    _

// kernel: moon_lenet_forward.4
$region0: #{moon_lenet_forward.4}
  #allocation0 [shape = 'u32[]', space=smem, size = 0x4, offset = 0x4, fixed_abs, tag = 'smem constant byte address 0x4 - core index']
  #allocation1 [shape = 'u32[144,128]{1,0:T(1,128)}', space=vmem, size = 0x12000, scoped, tag = 'internal scratch']
  %s0 = inlined_call_operand.vmem [shape: bf16[56,576], index: 0, kind: input, shape index: {}]
  %s1 = inlined_call_operand.vmem [shape: bf16[576,128], index: 1, kind: input, shape index: {}]
  %s2 = inlined_call_operand.vmem [shape: f32[1,128], index: 2, kind: input, shape index: {}]
  %s3 = inlined_call_operand.vmem [shape: bf16[56,128], index: 3, kind: output, shape index: {}]
  %s4 = sld [smem:[#allocation0]]
  $region22: #{moon_lenet_forward.4} parent=0
    _
  %s6 = ssub.s32 1, %s4
  %s7 = scalar_select 0, %s6, %s4
  // Predicated region
  $region2: #{moon_lenet_forward.4} parent=0 // pred_check
    _
  $region3: #{moon_lenet_forward.4} parent=0 // pred_check_branch
    %9 = sbr.rel (0) target = $region5
  $region4: #{moon_lenet_forward.4} parent=0 // pred_region
    _
  $region5: #{moon_lenet_forward.4} parent=0 // pred_fallthru
    _
  // Predicated region
  $region6: #{moon_lenet_forward.4} parent=0 // pred_check
    _
  $region7: #{moon_lenet_forward.4} parent=0 // pred_check_branch
    %11 = sbr.rel (0) target = $region9
  $region8: #{moon_lenet_forward.4} parent=0 // pred_region
    _
  $region9: #{moon_lenet_forward.4} parent=0 // pred_fallthru
    _
  // Predicated region
  $region10: #{moon_lenet_forward.4} parent=0 // pred_check
    _
  $region11: #{moon_lenet_forward.4} parent=0 // pred_check_branch
    %13 = sbr.rel (0) target = $region13
  $region12: #{moon_lenet_forward.4} parent=0 // pred_region
    _
  $region13: #{moon_lenet_forward.4} parent=0 // pred_fallthru
    _
  %v15 = vld [vmem:[%s0] sm:$0xff]
  %v16 = vld [vmem:[%s0 + $0x8] sm:$0xff]
  %v17 = vld [vmem:[%s0 + $0x10] sm:$0xf]
  %v18 = vld [vmem:[%s0 + $0x14] sm:$0xff]
  %v19 = vld [vmem:[%s0 + $0x1c] sm:$0xff]
  %v20 = vld [vmem:[%s0 + $0x24] sm:$0xf]
  %v21 = vld [vmem:[%s0 + $0x28] sm:$0xff]
  %v22 = vld [vmem:[%s0 + $0x30] sm:$0xff]
  %v23 = vld [vmem:[%s0 + $0x38] sm:$0xf]
  %v24 = vld [vmem:[%s0 + $0x3c] sm:$0xff]
  %v25 = vld [vmem:[%s0 + $0x44] sm:$0xff]
  %v26 = vld [vmem:[%s0 + $0x4c] sm:$0xf]
  %v27 = vld [vmem:[%s0 + $0x50] sm:$0xff]
  %v28 = vld [vmem:[%s0 + $0x58] sm:$0xff]
  %v29 = vld [vmem:[%s0 + $0x60] sm:$0xf]
  %v30 = vld [vmem:[%s0 + $0x64] sm:$0xff]
  %v31 = vld [vmem:[%s0 + $0x6c] sm:$0xff]
  %v32 = vld [vmem:[%s0 + $0x74] sm:$0xf]
  %v33 = vld [vmem:[%s0 + $0x78] sm:$0xff]
  %v34 = vld [vmem:[%s0 + $0x80] sm:$0xff]
  %v35 = vld [vmem:[%s0 + $0x88] sm:$0xf]
  %v36 = vld [vmem:[%s1] sm:$0xf]
  %v37 = vld [vmem:[%s1 + $0x4] sm:$0xf]
  %v38 = vld [vmem:[%s1 + $0x8] sm:$0xf]
  %v39 = vld [vmem:[%s1 + $0xc] sm:$0xf]
  %v40 = vld [vmem:[%s1 + $0x10] sm:$0xf]
  %v41 = vld [vmem:[%s1 + $0x14] sm:$0xf]
  %v42 = vld [vmem:[%s1 + $0x18] sm:$0xf]
  %v43 = vld [vmem:[%s1 + $0x1c] sm:$0xf]
  %v44 = vld [vmem:[%s1 + $0x20] sm:$0xf]
  %v45 = vld [vmem:[%s1 + $0x24] sm:$0xf]
  %v46 = vld [vmem:[%s1 + $0x28] sm:$0xf]
  %v47 = vld [vmem:[%s1 + $0x2c] sm:$0xf]
  %v48 = vld [vmem:[%s1 + $0x30] sm:$0xf]
  %v49 = vld [vmem:[%s1 + $0x34] sm:$0xf]
  %v50 = vld [vmem:[%s1 + $0x38] sm:$0xf]
  %v51 = vld [vmem:[%s1 + $0x3c] sm:$0xf]
  %v52 = vld [vmem:[%s1 + $0x40] sm:$0xf]
  %v53 = vld [vmem:[%s1 + $0x44] sm:$0xf]
  %v54 = vld [vmem:[%s1 + $0x48] sm:$0xf]
  %v55 = vld [vmem:[%s1 + $0x4c] sm:$0xf]
  %v56 = vld [vmem:[%s1 + $0x50] sm:$0xf]
  %v57 = vld [vmem:[%s1 + $0x54] sm:$0xf]
  %v58 = vld [vmem:[%s1 + $0x58] sm:$0xf]
  %v59 = vld [vmem:[%s1 + $0x5c] sm:$0xf]
  %v60 = vld [vmem:[%s1 + $0x60] sm:$0xf]
  %v61 = vld [vmem:[%s1 + $0x64] sm:$0xf]
  %v62 = vld [vmem:[%s1 + $0x68] sm:$0xf]
  %v63 = vld [vmem:[%s1 + $0x6c] sm:$0xf]
  %v64 = vld [vmem:[%s1 + $0x70] sm:$0xf]
  %v65 = vld [vmem:[%s1 + $0x74] sm:$0xf]
  %v66 = vld [vmem:[%s1 + $0x78] sm:$0xf]
  %v67 = vld [vmem:[%s1 + $0x7c] sm:$0xf]
  %v68 = vld [vmem:[%s1 + $0x80] sm:$0xf]
  %v69 = vld [vmem:[%s1 + $0x84] sm:$0xf]
  %v70 = vld [vmem:[%s1 + $0x88] sm:$0xf]
  %v71 = vld [vmem:[%s1 + $0x8c] sm:$0xf]
  %v72 = vld [vmem:[%s1 + $0x90] sm:$0xf]
  %v73 = vld [vmem:[%s1 + $0x94] sm:$0xf]
  %v74 = vld [vmem:[%s1 + $0x98] sm:$0xf]
  %v75 = vld [vmem:[%s1 + $0x9c] sm:$0xf]
  %v76 = vld [vmem:[%s1 + $0xa0] sm:$0xf]
  %v77 = vld [vmem:[%s1 + $0xa4] sm:$0xf]
  %v78 = vld [vmem:[%s1 + $0xa8] sm:$0xf]
  %v79 = vld [vmem:[%s1 + $0xac] sm:$0xf]
  %v80 = vld [vmem:[%s1 + $0xb0] sm:$0xf]
  %v81 = vld [vmem:[%s1 + $0xb4] sm:$0xf]
  %v82 = vld [vmem:[%s1 + $0xb8] sm:$0xf]
  %v83 = vld [vmem:[%s1 + $0xbc] sm:$0xf]
  %v84 = vld [vmem:[%s1 + $0xc0] sm:$0xf]
  %v85 = vld [vmem:[%s1 + $0xc4] sm:$0xf]
  %v86 = vld [vmem:[%s1 + $0xc8] sm:$0xf]
  %v87 = vld [vmem:[%s1 + $0xcc] sm:$0xf]
  %v88 = vld [vmem:[%s1 + $0xd0] sm:$0xf]
  %v89 = vld [vmem:[%s1 + $0xd4] sm:$0xf]
  %v90 = vld [vmem:[%s1 + $0xd8] sm:$0xf]
  %v91 = vld [vmem:[%s1 + $0xdc] sm:$0xf]
  %v92 = vld [vmem:[%s1 + $0xe0] sm:$0xf]
  %v93 = vld [vmem:[%s1 + $0xe4] sm:$0xf]
  %v94 = vld [vmem:[%s1 + $0xe8] sm:$0xf]
  %v95 = vld [vmem:[%s1 + $0xec] sm:$0xf]
  %v96 = vld [vmem:[%s1 + $0xf0] sm:$0xf]
  %v97 = vld [vmem:[%s1 + $0xf4] sm:$0xf]
  %v98 = vld [vmem:[%s1 + $0xf8] sm:$0xf]
  %v99 = vld [vmem:[%s1 + $0xfc] sm:$0xf]
  %v100 = vld [vmem:[%s1 + $0x100] sm:$0xf]
  %v101 = vld [vmem:[%s1 + $0x104] sm:$0xf]
  %v102 = vld [vmem:[%s1 + $0x108] sm:$0xf]
  %v103 = vld [vmem:[%s1 + $0x10c] sm:$0xf]
  %v104 = vld [vmem:[%s1 + $0x110] sm:$0xf]
  %v105 = vld [vmem:[%s1 + $0x114] sm:$0xf]
  %v106 = vld [vmem:[%s1 + $0x118] sm:$0xf]
  %v107 = vld [vmem:[%s1 + $0x11c] sm:$0xf]
  %v108 = vld [vmem:[%s2] sm:$0x1]
  %v110 = vlaneseq
  %v111 = vshrl.u32 %v110, 7
  %v112 = vsub.s32 0, %v111
  %v113 = vrot.slane %v108, %v112
  %v136 = vunpack.c.l.b16 %v15
  %v137 = vunpack.c.h.b16 %v15
  %v138 = vunpack.c.l.b16 %v16
  %v139 = vunpack.c.h.b16 %v16
  %v140 = vunpack.c.l.b16 %v17
  %v141 = vunpack.c.l.b16 %v18
  %v142 = vunpack.c.h.b16 %v18
  %v143 = vunpack.c.l.b16 %v19
  %v144 = vunpack.c.h.b16 %v19
  %v145 = vunpack.c.l.b16 %v20
  %v146 = vunpack.c.l.b16 %v21
  %v147 = vunpack.c.h.b16 %v21
  %v148 = vunpack.c.l.b16 %v22
  %v149 = vunpack.c.h.b16 %v22
  %v150 = vunpack.c.l.b16 %v23
  %v151 = vunpack.c.l.b16 %v24
  %v152 = vunpack.c.h.b16 %v24
  %v153 = vunpack.c.l.b16 %v25
  %v154 = vunpack.c.h.b16 %v25
  %v155 = vunpack.c.l.b16 %v26
  %v156 = vunpack.c.l.b16 %v27
  %v157 = vunpack.c.h.b16 %v27
  %v158 = vunpack.c.l.b16 %v28
  %v159 = vunpack.c.h.b16 %v28
  %v160 = vunpack.c.l.b16 %v29
  %v161 = vunpack.c.l.b16 %v30
  %v162 = vunpack.c.h.b16 %v30
  %v163 = vunpack.c.l.b16 %v31
  %v164 = vunpack.c.h.b16 %v31
  %v165 = vunpack.c.l.b16 %v32
  %v166 = vunpack.c.l.b16 %v33
  %v167 = vunpack.c.h.b16 %v33
  %v168 = vunpack.c.l.b16 %v34
  %v169 = vunpack.c.h.b16 %v34
  %v170 = vunpack.c.l.b16 %v35
  %v171 = vpack.c.b16 %v141, %v136
  %v172 = vpack.c.b16 %v142, %v137
  %v173 = vpack.c.b16 %v143, %v138
  %v174 = vpack.c.b16 %v144, %v139
  %v175 = vpack.c.b16 %v145, %v140
  %v176 = vpack.c.b16 %v151, %v146
  %v177 = vpack.c.b16 %v152, %v147
  %v178 = vpack.c.b16 %v153, %v148
  %v179 = vpack.c.b16 %v154, %v149
  %v180 = vpack.c.b16 %v155, %v150
  %v181 = vpack.c.b16 %v161, %v156
  %v182 = vpack.c.b16 %v162, %v157
  %v183 = vpack.c.b16 %v163, %v158
  %v184 = vpack.c.b16 %v164, %v159
  %v185 = vpack.c.b16 %v165, %v160
  %v186 = vpack.c.b16 %v166, %v166
  %v187 = vpack.c.b16 %v167, %v167
  %v188 = vpack.c.b16 %v168, %v168
  %v189 = vpack.c.b16 %v169, %v169
  %v190 = vpack.c.b16 %v170, %v170
  %v279 = vunpack.c.l.b16 %v36
  %v280 = vunpack.c.l.b16 %v37
  %v281 = vunpack.c.l.b16 %v38
  %v282 = vunpack.c.l.b16 %v39
  %v283 = vunpack.c.l.b16 %v40
  %v284 = vunpack.c.l.b16 %v41
  %v285 = vunpack.c.l.b16 %v42
  %v286 = vunpack.c.l.b16 %v43
  %v287 = vunpack.c.l.b16 %v44
  %v288 = vunpack.c.l.b16 %v45
  %v289 = vunpack.c.l.b16 %v46
  %v290 = vunpack.c.l.b16 %v47
  %v291 = vunpack.c.l.b16 %v48
  %v292 = vunpack.c.l.b16 %v49
  %v293 = vunpack.c.l.b16 %v50
  %v294 = vunpack.c.l.b16 %v51
  %v295 = vunpack.c.l.b16 %v52
  %v296 = vunpack.c.l.b16 %v53
  %v297 = vunpack.c.l.b16 %v54
  %v298 = vunpack.c.l.b16 %v55
  %v299 = vunpack.c.l.b16 %v56
  %v300 = vunpack.c.l.b16 %v57
  %v301 = vunpack.c.l.b16 %v58
  %v302 = vunpack.c.l.b16 %v59
  %v303 = vunpack.c.l.b16 %v60
  %v304 = vunpack.c.l.b16 %v61
  %v305 = vunpack.c.l.b16 %v62
  %v306 = vunpack.c.l.b16 %v63
  %v307 = vunpack.c.l.b16 %v64
  %v308 = vunpack.c.l.b16 %v65
  %v309 = vunpack.c.l.b16 %v66
  %v310 = vunpack.c.l.b16 %v67
  %v311 = vunpack.c.l.b16 %v68
  %v312 = vunpack.c.l.b16 %v69
  %v313 = vunpack.c.l.b16 %v70
  %v314 = vunpack.c.l.b16 %v71
  %v315 = vunpack.c.l.b16 %v72
  %v316 = vunpack.c.l.b16 %v73
  %v317 = vunpack.c.l.b16 %v74
  %v318 = vunpack.c.l.b16 %v75
  %v319 = vunpack.c.l.b16 %v76
  %v320 = vunpack.c.l.b16 %v77
  %v321 = vunpack.c.l.b16 %v78
  %v322 = vunpack.c.l.b16 %v79
  %v323 = vunpack.c.l.b16 %v80
  %v324 = vunpack.c.l.b16 %v81
  %v325 = vunpack.c.l.b16 %v82
  %v326 = vunpack.c.l.b16 %v83
  %v327 = vunpack.c.l.b16 %v84
  %v328 = vunpack.c.l.b16 %v85
  %v329 = vunpack.c.l.b16 %v86
  %v330 = vunpack.c.l.b16 %v87
  %v331 = vunpack.c.l.b16 %v88
  %v332 = vunpack.c.l.b16 %v89
  %v333 = vunpack.c.l.b16 %v90
  %v334 = vunpack.c.l.b16 %v91
  %v335 = vunpack.c.l.b16 %v92
  %v336 = vunpack.c.l.b16 %v93
  %v337 = vunpack.c.l.b16 %v94
  %v338 = vunpack.c.l.b16 %v95
  %v339 = vunpack.c.l.b16 %v96
  %v340 = vunpack.c.l.b16 %v97
  %v341 = vunpack.c.l.b16 %v98
  %v342 = vunpack.c.l.b16 %v99
  %v343 = vunpack.c.l.b16 %v100
  %v344 = vunpack.c.l.b16 %v101
  %v345 = vunpack.c.l.b16 %v102
  %v346 = vunpack.c.l.b16 %v103
  %v347 = vunpack.c.l.b16 %v104
  %v348 = vunpack.c.l.b16 %v105
  %v349 = vunpack.c.l.b16 %v106
  %v350 = vunpack.c.l.b16 %v107
  %v351 = vpack.c.b16 %v280, %v279
  %v352 = vpack.c.b16 %v282, %v281
  %v353 = vpack.c.b16 %v284, %v283
  %v354 = vpack.c.b16 %v286, %v285
  %v355 = vpack.c.b16 %v288, %v287
  %v356 = vpack.c.b16 %v290, %v289
  %v357 = vpack.c.b16 %v292, %v291
  %v358 = vpack.c.b16 %v294, %v293
  %v359 = vpack.c.b16 %v296, %v295
  %v360 = vpack.c.b16 %v298, %v297
  %v361 = vpack.c.b16 %v300, %v299
  %v362 = vpack.c.b16 %v302, %v301
  %v363 = vpack.c.b16 %v304, %v303
  %v364 = vpack.c.b16 %v306, %v305
  %v365 = vpack.c.b16 %v308, %v307
  %v366 = vpack.c.b16 %v310, %v309
  %v367 = vpack.c.b16 %v312, %v311
  %v368 = vpack.c.b16 %v314, %v313
  %v369 = vpack.c.b16 %v316, %v315
  %v370 = vpack.c.b16 %v318, %v317
  %v371 = vpack.c.b16 %v320, %v319
  %v372 = vpack.c.b16 %v322, %v321
  %v373 = vpack.c.b16 %v324, %v323
  %v374 = vpack.c.b16 %v326, %v325
  %v375 = vpack.c.b16 %v328, %v327
  %v376 = vpack.c.b16 %v330, %v329
  %v377 = vpack.c.b16 %v332, %v331
  %v378 = vpack.c.b16 %v334, %v333
  %v379 = vpack.c.b16 %v336, %v335
  %v380 = vpack.c.b16 %v338, %v337
  %v381 = vpack.c.b16 %v340, %v339
  %v382 = vpack.c.b16 %v342, %v341
  %v383 = vpack.c.b16 %v344, %v343
  %v384 = vpack.c.b16 %v346, %v345
  %v385 = vpack.c.b16 %v348, %v347
  %v386 = vpack.c.b16 %v350, %v349
  %vm423 = vcmask 523264
  %v425 = vsel %vm423, %v175, 0
  %v428 = vsel %vm423, %v180, 0
  %v431 = vsel %vm423, %v185, 0
  %v434 = vsel %vm423, %v190, 0
  %436 = vmatprep.subr.bf16.mxu0 0
  %437 = vmatpush1.bf16.msra.mxu0 %v351
  %438 = vmatprep.subr.bf16.mxu0 0
  %439 = vmatpush1.bf16.msra.mxu0 %v352
  %440 = vmatprep.subr.bf16.mxu0 0
  %441 = vmatpush1.bf16.msra.mxu0 %v353
  %442 = vmatprep.subr.bf16.mxu0 0
  %443 = vmatpush1.bf16.msra.mxu0 %v354
  %444 = vmatprep.subr.bf16.mxu0 0
  %445 = vmatpush1.bf16.msra.mxu0 %v355
  %446 = vmatprep.subr.bf16.mxu0 0
  %447 = vmatpush1.bf16.msra.mxu0 %v356
  %448 = vmatprep.subr.bf16.mxu0 0
  %449 = vmatpush1.bf16.msra.mxu0 %v357
  %450 = vmatprep.subr.bf16.mxu0 0
  %451 = vmatpush1.bf16.msra.mxu0 %v358
  %452 = vmatprep.subr.bf16.mxu0 0
  %453 = vmatpush1.bf16.msra.mxu0 %v359
  %454 = vmatprep.subr.bf16.mxu0 0
  %455 = vmatpush1.bf16.msra.mxu0 %v360
  %456 = vmatprep.subr.bf16.mxu0 0
  %457 = vmatpush1.bf16.msra.mxu0 %v361
  %458 = vmatprep.subr.bf16.mxu0 0
  %459 = vmatpush1.bf16.msra.mxu0 %v362
  %460 = vmatprep.subr.bf16.mxu0 0
  %461 = vmatpush1.bf16.msra.mxu0 %v363
  %462 = vmatprep.subr.bf16.mxu0 0
  %463 = vmatpush1.bf16.msra.mxu0 %v364
  %464 = vmatprep.subr.bf16.mxu0 0
  %465 = vmatpush1.bf16.msra.mxu0 %v365
  %466 = vmatprep.subr.bf16.mxu0 0
  %467 = vmatpush1.bf16.msra.mxu0 %v366
  %468 = vmatprep.mubr.bf16.mxu0 %v172
  %469 = vmatmul.mubr.bf16.gmra.mrb[0].mxu0 %v171
  %v470 = vpop.f32.mrb[0].mxu0
  %v471 = vadd.f32 %v113, %v470
  %v472 = vpop.f32.mrb[0].mxu0
  %v473 = vpop.f32.mrb[0].mxu0
  %v474 = vadd.f32 %v113, %v473
  %v475 = vpop.f32.mrb[0].mxu0
  %476 = vmatprep.mubr.bf16.mxu0 %v177
  %477 = vmatmul.mubr.bf16.gmra.mrb[0].mxu0 %v176
  %v478 = vpop.f32.mrb[0].mxu0
  %v479 = vadd.f32 %v113, %v478
  %v480 = vpop.f32.mrb[0].mxu0
  %v481 = vpop.f32.mrb[0].mxu0
  %v482 = vadd.f32 %v113, %v481
  %v483 = vpop.f32.mrb[0].mxu0
  %484 = vmatprep.mubr.bf16.mxu0 %v182
  %485 = vmatmul.mubr.bf16.gmra.mrb[0].mxu0 %v181
  %v486 = vpop.f32.mrb[0].mxu0
  %v487 = vadd.f32 %v113, %v486
  %v488 = vpop.f32.mrb[0].mxu0
  %v489 = vpop.f32.mrb[0].mxu0
  %v490 = vadd.f32 %v113, %v489
  %v491 = vpop.f32.mrb[0].mxu0
  %492 = vmatprep.mubr.bf16.mxu0 %v187
  %493 = vmatmul.mubr.bf16.gmra.mrb[0].mxu0 %v186
  %v494 = vpop.f32.mrb[0].mxu0
  %v495 = vadd.f32 %v113, %v494
  %v496 = vpop.f32.mrb[0].mxu0
  %v497 = vpop.f32.mrb[0].mxu0
  %v498 = vpop.f32.mrb[0].mxu0
  %499 = vdwg.mxu0
  %500 = vmatprep.subr.bf16.mxu0 0
  %501 = vmatpush1.bf16.msra.mxu0 %v367
  %502 = vmatprep.subr.bf16.mxu0 0
  %503 = vmatpush1.bf16.msra.mxu0 %v368
  %504 = vmatprep.subr.bf16.mxu0 0
  %505 = vmatpush1.bf16.msra.mxu0 %v369
  %506 = vmatprep.subr.bf16.mxu0 0
  %507 = vmatpush1.bf16.msra.mxu0 %v370
  %508 = vmatprep.subr.bf16.mxu0 0
  %509 = vmatpush1.bf16.msra.mxu0 %v371
  %510 = vmatprep.subr.bf16.mxu0 0
  %511 = vmatpush1.bf16.msra.mxu0 %v372
  %512 = vmatprep.subr.bf16.mxu0 0
  %513 = vmatpush1.bf16.msra.mxu0 %v373
  %514 = vmatprep.subr.bf16.mxu0 0
  %515 = vmatpush1.bf16.msra.mxu0 %v374
  %516 = vmatprep.subr.bf16.mxu0 0
  %517 = vmatpush1.bf16.msra.mxu0 %v375
  %518 = vmatprep.subr.bf16.mxu0 0
  %519 = vmatpush1.bf16.msra.mxu0 %v376
  %520 = vmatprep.subr.bf16.mxu0 0
  %521 = vmatpush1.bf16.msra.mxu0 %v377
  %522 = vmatprep.subr.bf16.mxu0 0
  %523 = vmatpush1.bf16.msra.mxu0 %v378
  %524 = vmatprep.subr.bf16.mxu0 0
  %525 = vmatpush1.bf16.msra.mxu0 %v379
  %526 = vmatprep.subr.bf16.mxu0 0
  %527 = vmatpush1.bf16.msra.mxu0 %v380
  %528 = vmatprep.subr.bf16.mxu0 0
  %529 = vmatpush1.bf16.msra.mxu0 %v381
  %530 = vmatprep.subr.bf16.mxu0 0
  %531 = vmatpush1.bf16.msra.mxu0 %v382
  %532 = vmatprep.mubr.bf16.mxu0 %v174
  %533 = vmatmul.mubr.bf16.gmra.mrb[0].mxu0 %v173
  %v534 = vpop.f32.mrb[0].mxu0
  %v535 = vadd.f32 %v471, %v534
  %v536 = vpop.f32.mrb[0].mxu0
  %v537 = vpop.f32.mrb[0].mxu0
  %v538 = vadd.f32 %v474, %v537
  %v539 = vpop.f32.mrb[0].mxu0
  %540 = vmatprep.mubr.bf16.mxu0 %v179
  %541 = vmatmul.mubr.bf16.gmra.mrb[0].mxu0 %v178
  %v542 = vpop.f32.mrb[0].mxu0
  %v543 = vadd.f32 %v479, %v542
  %v544 = vpop.f32.mrb[0].mxu0
  %v545 = vpop.f32.mrb[0].mxu0
  %v546 = vadd.f32 %v482, %v545
  %v547 = vpop.f32.mrb[0].mxu0
  %548 = vmatprep.mubr.bf16.mxu0 %v184
  %549 = vmatmul.mubr.bf16.gmra.mrb[0].mxu0 %v183
  %v550 = vpop.f32.mrb[0].mxu0
  %v551 = vadd.f32 %v487, %v550
  %v552 = vpop.f32.mrb[0].mxu0
  %v553 = vpop.f32.mrb[0].mxu0
  %v554 = vadd.f32 %v490, %v553
  %v555 = vpop.f32.mrb[0].mxu0
  %556 = vmatprep.mubr.bf16.mxu0 %v189
  %557 = vmatmul.mubr.bf16.gmra.mrb[0].mxu0 %v188
  %v558 = vpop.f32.mrb[0].mxu0
  %v559 = vadd.f32 %v495, %v558
  %v560 = vpop.f32.mrb[0].mxu0
  %v561 = vpop.f32.mrb[0].mxu0
  %v562 = vpop.f32.mrb[0].mxu0
  %563 = vdwg.mxu0
  %564 = vmatprep.subr.bf16.mxu0 0
  %565 = vmatpush1.bf16.msra.mxu0 %v383
  %566 = vmatprep.subr.bf16.mxu0 0
  %567 = vmatpush1.bf16.msra.mxu0 %v384
  %568 = vmatprep.subr.bf16.mxu0 0
  %569 = vmatpush1.bf16.msra.mxu0 %v385
  %570 = vmatprep.subr.bf16.mxu0 0
  %571 = vmatpush1.bf16.msra.mxu0 %v386
  %572 = vmatprep.subr.bf16.mxu0 0
  %573 = vmatpush1.bf16.msra.mxu0 0
  %574 = vmatprep.subr.bf16.mxu0 0
  %575 = vmatpush1.bf16.msra.mxu0 0
  %576 = vmatprep.subr.bf16.mxu0 0
  %577 = vmatpush1.bf16.msra.mxu0 0
  %578 = vmatprep.subr.bf16.mxu0 0
  %579 = vmatpush1.bf16.msra.mxu0 0
  %580 = vmatprep.subr.bf16.mxu0 0
  %581 = vmatpush1.bf16.msra.mxu0 0
  %582 = vmatprep.subr.bf16.mxu0 0
  %583 = vmatpush1.bf16.msra.mxu0 0
  %584 = vmatprep.subr.bf16.mxu0 0
  %585 = vmatpush1.bf16.msra.mxu0 0
  %586 = vmatprep.subr.bf16.mxu0 0
  %587 = vmatpush1.bf16.msra.mxu0 0
  %588 = vmatprep.subr.bf16.mxu0 0
  %589 = vmatpush1.bf16.msra.mxu0 0
  %590 = vmatprep.subr.bf16.mxu0 0
  %591 = vmatpush1.bf16.msra.mxu0 0
  %592 = vmatprep.subr.bf16.mxu0 0
  %593 = vmatpush1.bf16.msra.mxu0 0
  %594 = vmatprep.subr.bf16.mxu0 0
  %595 = vmatpush1.bf16.msra.mxu0 0
  %596 = vmatprep.mubr.bf16.mxu0 0
  %597 = vmatmul.mubr.bf16.gmra.mrb[0].mxu0 %v425
  %v598 = vpop.f32.mrb[0].mxu0
  %v599 = vadd.f32 %v535, %v598
  %v600 = vpop.f32.mrb[0].mxu0
  %v601 = vpop.f32.mrb[0].mxu0
  %v602 = vadd.f32 %v538, %v601
  %v603 = vpop.f32.mrb[0].mxu0
  %604 = vmatprep.mubr.bf16.mxu0 0
  %605 = vmatmul.mubr.bf16.gmra.mrb[0].mxu0 %v428
  %v606 = vpop.f32.mrb[0].mxu0
  %v607 = vadd.f32 %v543, %v606
  %v608 = vpop.f32.mrb[0].mxu0
  %v609 = vpop.f32.mrb[0].mxu0
  %v610 = vadd.f32 %v546, %v609
  %v611 = vpop.f32.mrb[0].mxu0
  %612 = vmatprep.mubr.bf16.mxu0 0
  %613 = vmatmul.mubr.bf16.gmra.mrb[0].mxu0 %v431
  %v614 = vpop.f32.mrb[0].mxu0
  %v615 = vadd.f32 %v551, %v614
  %v616 = vpop.f32.mrb[0].mxu0
  %v617 = vpop.f32.mrb[0].mxu0
  %v618 = vadd.f32 %v554, %v617
  %v619 = vpop.f32.mrb[0].mxu0
  %620 = vmatprep.mubr.bf16.mxu0 0
  %621 = vmatmul.mubr.bf16.gmra.mrb[0].mxu0 %v434
  %v622 = vpop.f32.mrb[0].mxu0
  %v623 = vadd.f32 %v559, %v622
  %v624 = vpop.f32.mrb[0].mxu0
  %v625 = vpop.f32.mrb[0].mxu0
  %v626 = vpop.f32.mrb[0].mxu0
  %627 = vdwg.mxu0
  %v628 = vpack.c.bf16 %v602, %v599
  %v629 = vpack.c.bf16 %v610, %v607
  %v630 = vpack.c.bf16 %v618, %v615
  %v631 = vpack.c.bf16 %v623, %v623
  %v636 = vunpack.c.l.b16 %v628
  %v637 = vunpack.c.h.b16 %v628
  %v638 = vunpack.c.l.b16 %v629
  %v639 = vunpack.c.h.b16 %v629
  %v640 = vunpack.c.l.b16 %v630
  %v641 = vunpack.c.h.b16 %v630
  %v642 = vunpack.c.l.b16 %v631
  %v643 = vpack.c.b16 %v636, %v636
  %v644 = vpack.c.b16 %v637, %v637
  %v645 = vpack.c.b16 %v638, %v638
  %v646 = vpack.c.b16 %v639, %v639
  %v647 = vpack.c.b16 %v640, %v640
  %v648 = vpack.c.b16 %v641, %v641
  %v649 = vpack.c.b16 %v642, %v642
  %657 = vst [vmem:[%s3] sm:$0xf] %v643
  %658 = vst [vmem:[%s3 + $0x4] sm:$0xf] %v644
  %659 = vst [vmem:[%s3 + $0x8] sm:$0xf] %v645
  %660 = vst [vmem:[%s3 + $0xc] sm:$0xf] %v646
  %661 = vst [vmem:[%s3 + $0x10] sm:$0xf] %v647
  %662 = vst [vmem:[%s3 + $0x14] sm:$0xf] %v648
  %663 = vst [vmem:[%s3 + $0x18] sm:$0xf] %v649
  // Predicated region
  $region14: #{moon_lenet_forward.4} parent=0 // pred_check
    _
  $region15: #{moon_lenet_forward.4} parent=0 // pred_check_branch
    %665 = sbr.rel (0) target = $region17
  $region16: #{moon_lenet_forward.4} parent=0 // pred_region
    _
  $region17: #{moon_lenet_forward.4} parent=0 // pred_fallthru
    _
  // Predicated region
  $region18: #{moon_lenet_forward.4} parent=0 // pred_check
    _
  $region19: #{moon_lenet_forward.4} parent=0 // pred_check_branch
    %667 = sbr.rel (0) target = $region21
  $region20: #{moon_lenet_forward.4} parent=0 // pred_region
    _
  $region21: #{moon_lenet_forward.4} parent=0 // pred_fallthru
    _

// kernel: moon_lenet_forward.5
$region0: #{moon_lenet_forward.5}
  #allocation0 [shape = 'u32[]', space=smem, size = 0x4, offset = 0x4, fixed_abs, tag = 'smem constant byte address 0x4 - core index']
  #allocation1 [shape = 'u32[144,128]{1,0:T(1,128)}', space=vmem, size = 0x12000, scoped, tag = 'internal scratch']
  %s0 = inlined_call_operand.vmem [shape: bf16[8,800], index: 0, kind: input, shape index: {}]
  %s1 = inlined_call_operand.vmem [shape: bf16[800,128], index: 1, kind: input, shape index: {}]
  %s2 = inlined_call_operand.vmem [shape: f32[1,128], index: 2, kind: input, shape index: {}]
  %s3 = inlined_call_operand.vmem [shape: bf16[128,128], index: 3, kind: input, shape index: {}]
  %s4 = inlined_call_operand.vmem [shape: f32[1,128], index: 4, kind: input, shape index: {}]
  %s5 = inlined_call_operand.vmem [shape: bf16[128,128], index: 5, kind: input, shape index: {}]
  %s6 = inlined_call_operand.vmem [shape: f32[1,128], index: 6, kind: input, shape index: {}]
  %s7 = inlined_call_operand.vmem [shape: bf16[128,256], index: 7, kind: input, shape index: {}]
  %s8 = inlined_call_operand.vmem [shape: f32[1,256], index: 8, kind: input, shape index: {}]
  %s9 = inlined_call_operand.vmem [shape: bf16[256,128], index: 9, kind: input, shape index: {}]
  %s10 = inlined_call_operand.vmem [shape: f32[1,128], index: 10, kind: input, shape index: {}]
  %s11 = inlined_call_operand.vmem [shape: f32[8,128], index: 11, kind: output, shape index: {0}]
  %s12 = inlined_call_operand.vmem [shape: f32[8,256], index: 12, kind: output, shape index: {1}]
  %s13 = inlined_call_operand.vmem [shape: f32[8,128], index: 13, kind: output, shape index: {2}]
  %14 = xla_tuple %s11, %s12, %s13
  %s15 = sld [smem:[#allocation0]]
  $region70: #{moon_lenet_forward.5} parent=0
    _
  %s17 = ssub.s32 1, %s15
  %s18 = scalar_select 0, %s17, %s15
  // Predicated region
  $region2: #{moon_lenet_forward.5} parent=0 // pred_check
    _
  $region3: #{moon_lenet_forward.5} parent=0 // pred_check_branch
    %20 = sbr.rel (0) target = $region5
  $region4: #{moon_lenet_forward.5} parent=0 // pred_region
    _
  $region5: #{moon_lenet_forward.5} parent=0 // pred_fallthru
    _
  // Predicated region
  $region6: #{moon_lenet_forward.5} parent=0 // pred_check
    _
  $region7: #{moon_lenet_forward.5} parent=0 // pred_check_branch
    %22 = sbr.rel (0) target = $region9
  $region8: #{moon_lenet_forward.5} parent=0 // pred_region
    _
  $region9: #{moon_lenet_forward.5} parent=0 // pred_fallthru
    _
  // Predicated region
  $region10: #{moon_lenet_forward.5} parent=0 // pred_check
    _
  $region11: #{moon_lenet_forward.5} parent=0 // pred_check_branch
    %24 = sbr.rel (0) target = $region13
  $region12: #{moon_lenet_forward.5} parent=0 // pred_region
    _
  $region13: #{moon_lenet_forward.5} parent=0 // pred_fallthru
    _
  // Predicated region
  $region14: #{moon_lenet_forward.5} parent=0 // pred_check
    _
  $region15: #{moon_lenet_forward.5} parent=0 // pred_check_branch
    %26 = sbr.rel (0) target = $region17
  $region16: #{moon_lenet_forward.5} parent=0 // pred_region
    _
  $region17: #{moon_lenet_forward.5} parent=0 // pred_fallthru
    _
  // Predicated region
  $region18: #{moon_lenet_forward.5} parent=0 // pred_check
    _
  $region19: #{moon_lenet_forward.5} parent=0 // pred_check_branch
    %28 = sbr.rel (0) target = $region21
  $region20: #{moon_lenet_forward.5} parent=0 // pred_region
    _
  $region21: #{moon_lenet_forward.5} parent=0 // pred_fallthru
    _
  // Predicated region
  $region22: #{moon_lenet_forward.5} parent=0 // pred_check
    _
  $region23: #{moon_lenet_forward.5} parent=0 // pred_check_branch
    %30 = sbr.rel (0) target = $region25
  $region24: #{moon_lenet_forward.5} parent=0 // pred_region
    _
  $region25: #{moon_lenet_forward.5} parent=0 // pred_fallthru
    _
  // Predicated region
  $region26: #{moon_lenet_forward.5} parent=0 // pred_check
    _
  $region27: #{moon_lenet_forward.5} parent=0 // pred_check_branch
    %32 = sbr.rel (0) target = $region29
  $region28: #{moon_lenet_forward.5} parent=0 // pred_region
    _
  $region29: #{moon_lenet_forward.5} parent=0 // pred_fallthru
    _
  // Predicated region
  $region30: #{moon_lenet_forward.5} parent=0 // pred_check
    _
  $region31: #{moon_lenet_forward.5} parent=0 // pred_check_branch
    %34 = sbr.rel (0) target = $region33
  $region32: #{moon_lenet_forward.5} parent=0 // pred_region
    _
  $region33: #{moon_lenet_forward.5} parent=0 // pred_fallthru
    _
  // Predicated region
  $region34: #{moon_lenet_forward.5} parent=0 // pred_check
    _
  $region35: #{moon_lenet_forward.5} parent=0 // pred_check_branch
    %36 = sbr.rel (0) target = $region37
  $region36: #{moon_lenet_forward.5} parent=0 // pred_region
    _
  $region37: #{moon_lenet_forward.5} parent=0 // pred_fallthru
    _
  // Predicated region
  $region38: #{moon_lenet_forward.5} parent=0 // pred_check
    _
  $region39: #{moon_lenet_forward.5} parent=0 // pred_check_branch
    %38 = sbr.rel (0) target = $region41
  $region40: #{moon_lenet_forward.5} parent=0 // pred_region
    _
  $region41: #{moon_lenet_forward.5} parent=0 // pred_fallthru
    _
  // Predicated region
  $region42: #{moon_lenet_forward.5} parent=0 // pred_check
    _
  $region43: #{moon_lenet_forward.5} parent=0 // pred_check_branch
    %40 = sbr.rel (0) target = $region45
  $region44: #{moon_lenet_forward.5} parent=0 // pred_region
    _
  $region45: #{moon_lenet_forward.5} parent=0 // pred_fallthru
    _
  %v42 = vld [vmem:[%s0] sm:$0xff]
  %v43 = vld [vmem:[%s0 + $0x8] sm:$0xff]
  %v44 = vld [vmem:[%s0 + $0x10] sm:$0xff]
  %v45 = vld [vmem:[%s0 + $0x18] sm:$0xf]
  %v46 = vld [vmem:[%s1] sm:$0xf]
  %v47 = vld [vmem:[%s1 + $0x4] sm:$0xf]
  %v48 = vld [vmem:[%s1 + $0x8] sm:$0xf]
  %v49 = vld [vmem:[%s1 + $0xc] sm:$0xf]
  %v50 = vld [vmem:[%s1 + $0x10] sm:$0xf]
  %v51 = vld [vmem:[%s1 + $0x14] sm:$0xf]
  %v52 = vld [vmem:[%s1 + $0x18] sm:$0xf]
  %v53 = vld [vmem:[%s1 + $0x1c] sm:$0xf]
  %v54 = vld [vmem:[%s1 + $0x20] sm:$0xf]
  %v55 = vld [vmem:[%s1 + $0x24] sm:$0xf]
  %v56 = vld [vmem:[%s1 + $0x28] sm:$0xf]
  %v57 = vld [vmem:[%s1 + $0x2c] sm:$0xf]
  %v58 = vld [vmem:[%s1 + $0x30] sm:$0xf]
  %v59 = vld [vmem:[%s1 + $0x34] sm:$0xf]
  %v60 = vld [vmem:[%s1 + $0x38] sm:$0xf]
  %v61 = vld [vmem:[%s1 + $0x3c] sm:$0xf]
  %v62 = vld [vmem:[%s1 + $0x40] sm:$0xf]
  %v63 = vld [vmem:[%s1 + $0x44] sm:$0xf]
  %v64 = vld [vmem:[%s1 + $0x48] sm:$0xf]
  %v65 = vld [vmem:[%s1 + $0x4c] sm:$0xf]
  %v66 = vld [vmem:[%s1 + $0x50] sm:$0xf]
  %v67 = vld [vmem:[%s1 + $0x54] sm:$0xf]
  %v68 = vld [vmem:[%s1 + $0x58] sm:$0xf]
  %v69 = vld [vmem:[%s1 + $0x5c] sm:$0xf]
  %v70 = vld [vmem:[%s1 + $0x60] sm:$0xf]
  %v71 = vld [vmem:[%s1 + $0x64] sm:$0xf]
  %v72 = vld [vmem:[%s1 + $0x68] sm:$0xf]
  %v73 = vld [vmem:[%s1 + $0x6c] sm:$0xf]
  %v74 = vld [vmem:[%s1 + $0x70] sm:$0xf]
  %v75 = vld [vmem:[%s1 + $0x74] sm:$0xf]
  %v76 = vld [vmem:[%s1 + $0x78] sm:$0xf]
  %v77 = vld [vmem:[%s1 + $0x7c] sm:$0xf]
  %v78 = vld [vmem:[%s1 + $0x80] sm:$0xf]
  %v79 = vld [vmem:[%s1 + $0x84] sm:$0xf]
  %v80 = vld [vmem:[%s1 + $0x88] sm:$0xf]
  %v81 = vld [vmem:[%s1 + $0x8c] sm:$0xf]
  %v82 = vld [vmem:[%s1 + $0x90] sm:$0xf]
  %v83 = vld [vmem:[%s1 + $0x94] sm:$0xf]
  %v84 = vld [vmem:[%s1 + $0x98] sm:$0xf]
  %v85 = vld [vmem:[%s1 + $0x9c] sm:$0xf]
  %v86 = vld [vmem:[%s1 + $0xa0] sm:$0xf]
  %v87 = vld [vmem:[%s1 + $0xa4] sm:$0xf]
  %v88 = vld [vmem:[%s1 + $0xa8] sm:$0xf]
  %v89 = vld [vmem:[%s1 + $0xac] sm:$0xf]
  %v90 = vld [vmem:[%s1 + $0xb0] sm:$0xf]
  %v91 = vld [vmem:[%s1 + $0xb4] sm:$0xf]
  %v92 = vld [vmem:[%s1 + $0xb8] sm:$0xf]
  %v93 = vld [vmem:[%s1 + $0xbc] sm:$0xf]
  %v94 = vld [vmem:[%s1 + $0xc0] sm:$0xf]
  %v95 = vld [vmem:[%s1 + $0xc4] sm:$0xf]
  %v96 = vld [vmem:[%s1 + $0xc8] sm:$0xf]
  %v97 = vld [vmem:[%s1 + $0xcc] sm:$0xf]
  %v98 = vld [vmem:[%s1 + $0xd0] sm:$0xf]
  %v99 = vld [vmem:[%s1 + $0xd4] sm:$0xf]
  %v100 = vld [vmem:[%s1 + $0xd8] sm:$0xf]
  %v101 = vld [vmem:[%s1 + $0xdc] sm:$0xf]
  %v102 = vld [vmem:[%s1 + $0xe0] sm:$0xf]
  %v103 = vld [vmem:[%s1 + $0xe4] sm:$0xf]
  %v104 = vld [vmem:[%s1 + $0xe8] sm:$0xf]
  %v105 = vld [vmem:[%s1 + $0xec] sm:$0xf]
  %v106 = vld [vmem:[%s1 + $0xf0] sm:$0xf]
  %v107 = vld [vmem:[%s1 + $0xf4] sm:$0xf]
  %v108 = vld [vmem:[%s1 + $0xf8] sm:$0xf]
  %v109 = vld [vmem:[%s1 + $0xfc] sm:$0xf]
  %v110 = vld [vmem:[%s1 + $0x100] sm:$0xf]
  %v111 = vld [vmem:[%s1 + $0x104] sm:$0xf]
  %v112 = vld [vmem:[%s1 + $0x108] sm:$0xf]
  %v113 = vld [vmem:[%s1 + $0x10c] sm:$0xf]
  %v114 = vld [vmem:[%s1 + $0x110] sm:$0xf]
  %v115 = vld [vmem:[%s1 + $0x114] sm:$0xf]
  %v116 = vld [vmem:[%s1 + $0x118] sm:$0xf]
  %v117 = vld [vmem:[%s1 + $0x11c] sm:$0xf]
  %v118 = vld [vmem:[%s1 + $0x120] sm:$0xf]
  %v119 = vld [vmem:[%s1 + $0x124] sm:$0xf]
  %v120 = vld [vmem:[%s1 + $0x128] sm:$0xf]
  %v121 = vld [vmem:[%s1 + $0x12c] sm:$0xf]
  %v122 = vld [vmem:[%s1 + $0x130] sm:$0xf]
  %v123 = vld [vmem:[%s1 + $0x134] sm:$0xf]
  %v124 = vld [vmem:[%s1 + $0x138] sm:$0xf]
  %v125 = vld [vmem:[%s1 + $0x13c] sm:$0xf]
  %v126 = vld [vmem:[%s1 + $0x140] sm:$0xf]
  %v127 = vld [vmem:[%s1 + $0x144] sm:$0xf]
  %v128 = vld [vmem:[%s1 + $0x148] sm:$0xf]
  %v129 = vld [vmem:[%s1 + $0x14c] sm:$0xf]
  %v130 = vld [vmem:[%s1 + $0x150] sm:$0xf]
  %v131 = vld [vmem:[%s1 + $0x154] sm:$0xf]
  %v132 = vld [vmem:[%s1 + $0x158] sm:$0xf]
  %v133 = vld [vmem:[%s1 + $0x15c] sm:$0xf]
  %v134 = vld [vmem:[%s1 + $0x160] sm:$0xf]
  %v135 = vld [vmem:[%s1 + $0x164] sm:$0xf]
  %v136 = vld [vmem:[%s1 + $0x168] sm:$0xf]
  %v137 = vld [vmem:[%s1 + $0x16c] sm:$0xf]
  %v138 = vld [vmem:[%s1 + $0x170] sm:$0xf]
  %v139 = vld [vmem:[%s1 + $0x174] sm:$0xf]
  %v140 = vld [vmem:[%s1 + $0x178] sm:$0xf]
  %v141 = vld [vmem:[%s1 + $0x17c] sm:$0xf]
  %v142 = vld [vmem:[%s1 + $0x180] sm:$0xf]
  %v143 = vld [vmem:[%s1 + $0x184] sm:$0xf]
  %v144 = vld [vmem:[%s1 + $0x188] sm:$0xf]
  %v145 = vld [vmem:[%s1 + $0x18c] sm:$0xf]
  %v146 = vld [vmem:[%s2] sm:$0x1]
  %v148 = vlaneseq
  %v149 = vshrl.u32 %v148, 7
  %v150 = vsub.s32 0, %v149
  %v151 = vrot.slane %v146, %v150
  %v157 = vunpack.c.l.b16 %v42
  %v158 = vunpack.c.h.b16 %v42
  %v159 = vunpack.c.l.b16 %v43
  %v160 = vunpack.c.h.b16 %v43
  %v161 = vunpack.c.l.b16 %v44
  %v162 = vunpack.c.h.b16 %v44
  %v163 = vunpack.c.l.b16 %v45
  %v164 = vpack.c.b16 %v157, %v157
  %v165 = vpack.c.b16 %v158, %v158
  %v166 = vpack.c.b16 %v159, %v159
  %v167 = vpack.c.b16 %v160, %v160
  %v168 = vpack.c.b16 %v161, %v161
  %v169 = vpack.c.b16 %v162, %v162
  %v170 = vpack.c.b16 %v163, %v163
  %v277 = vunpack.c.l.b16 %v46
  %v278 = vunpack.c.l.b16 %v47
  %v279 = vunpack.c.l.b16 %v48
  %v280 = vunpack.c.l.b16 %v49
  %v281 = vunpack.c.l.b16 %v50
  %v282 = vunpack.c.l.b16 %v51
  %v283 = vunpack.c.l.b16 %v52
  %v284 = vunpack.c.l.b16 %v53
  %v285 = vunpack.c.l.b16 %v54
  %v286 = vunpack.c.l.b16 %v55
  %v287 = vunpack.c.l.b16 %v56
  %v288 = vunpack.c.l.b16 %v57
  %v289 = vunpack.c.l.b16 %v58
  %v290 = vunpack.c.l.b16 %v59
  %v291 = vunpack.c.l.b16 %v60
  %v292 = vunpack.c.l.b16 %v61
  %v293 = vunpack.c.l.b16 %v62
  %v294 = vunpack.c.l.b16 %v63
  %v295 = vunpack.c.l.b16 %v64
  %v296 = vunpack.c.l.b16 %v65
  %v297 = vunpack.c.l.b16 %v66
  %v298 = vunpack.c.l.b16 %v67
  %v299 = vunpack.c.l.b16 %v68
  %v300 = vunpack.c.l.b16 %v69
  %v301 = vunpack.c.l.b16 %v70
  %v302 = vunpack.c.l.b16 %v71
  %v303 = vunpack.c.l.b16 %v72
  %v304 = vunpack.c.l.b16 %v73
  %v305 = vunpack.c.l.b16 %v74
  %v306 = vunpack.c.l.b16 %v75
  %v307 = vunpack.c.l.b16 %v76
  %v308 = vunpack.c.l.b16 %v77
  %v309 = vunpack.c.l.b16 %v78
  %v310 = vunpack.c.l.b16 %v79
  %v311 = vunpack.c.l.b16 %v80
  %v312 = vunpack.c.l.b16 %v81
  %v313 = vunpack.c.l.b16 %v82
  %v314 = vunpack.c.l.b16 %v83
  %v315 = vunpack.c.l.b16 %v84
  %v316 = vunpack.c.l.b16 %v85
  %v317 = vunpack.c.l.b16 %v86
  %v318 = vunpack.c.l.b16 %v87
  %v319 = vunpack.c.l.b16 %v88
  %v320 = vunpack.c.l.b16 %v89
  %v321 = vunpack.c.l.b16 %v90
  %v322 = vunpack.c.l.b16 %v91
  %v323 = vunpack.c.l.b16 %v92
  %v324 = vunpack.c.l.b16 %v93
  %v325 = vunpack.c.l.b16 %v94
  %v326 = vunpack.c.l.b16 %v95
  %v327 = vunpack.c.l.b16 %v96
  %v328 = vunpack.c.l.b16 %v97
  %v329 = vunpack.c.l.b16 %v98
  %v330 = vunpack.c.l.b16 %v99
  %v331 = vunpack.c.l.b16 %v100
  %v332 = vunpack.c.l.b16 %v101
  %v333 = vunpack.c.l.b16 %v102
  %v334 = vunpack.c.l.b16 %v103
  %v335 = vunpack.c.l.b16 %v104
  %v336 = vunpack.c.l.b16 %v105
  %v337 = vunpack.c.l.b16 %v106
  %v338 = vunpack.c.l.b16 %v107
  %v339 = vunpack.c.l.b16 %v108
  %v340 = vunpack.c.l.b16 %v109
  %v341 = vunpack.c.l.b16 %v110
  %v342 = vunpack.c.l.b16 %v111
  %v343 = vunpack.c.l.b16 %v112
  %v344 = vunpack.c.l.b16 %v113
  %v345 = vunpack.c.l.b16 %v114
  %v346 = vunpack.c.l.b16 %v115
  %v347 = vunpack.c.l.b16 %v116
  %v348 = vunpack.c.l.b16 %v117
  %v349 = vunpack.c.l.b16 %v118
  %v350 = vunpack.c.l.b16 %v119
  %v351 = vunpack.c.l.b16 %v120
  %v352 = vunpack.c.l.b16 %v121
  %v353 = vunpack.c.l.b16 %v122
  %v354 = vunpack.c.l.b16 %v123
  %v355 = vunpack.c.l.b16 %v124
  %v356 = vunpack.c.l.b16 %v125
  %v357 = vunpack.c.l.b16 %v126
  %v358 = vunpack.c.l.b16 %v127
  %v359 = vunpack.c.l.b16 %v128
  %v360 = vunpack.c.l.b16 %v129
  %v361 = vunpack.c.l.b16 %v130
  %v362 = vunpack.c.l.b16 %v131
  %v363 = vunpack.c.l.b16 %v132
  %v364 = vunpack.c.l.b16 %v133
  %v365 = vunpack.c.l.b16 %v134
  %v366 = vunpack.c.l.b16 %v135
  %v367 = vunpack.c.l.b16 %v136
  %v368 = vunpack.c.l.b16 %v137
  %v369 = vunpack.c.l.b16 %v138
  %v370 = vunpack.c.l.b16 %v139
  %v371 = vunpack.c.l.b16 %v140
  %v372 = vunpack.c.l.b16 %v141
  %v373 = vunpack.c.l.b16 %v142
  %v374 = vunpack.c.l.b16 %v143
  %v375 = vunpack.c.l.b16 %v144
  %v376 = vunpack.c.l.b16 %v145
  %v377 = vpack.c.b16 %v278, %v277
  %v378 = vpack.c.b16 %v280, %v279
  %v379 = vpack.c.b16 %v282, %v281
  %v380 = vpack.c.b16 %v284, %v283
  %v381 = vpack.c.b16 %v286, %v285
  %v382 = vpack.c.b16 %v288, %v287
  %v383 = vpack.c.b16 %v290, %v289
  %v384 = vpack.c.b16 %v292, %v291
  %v385 = vpack.c.b16 %v294, %v293
  %v386 = vpack.c.b16 %v296, %v295
  %v387 = vpack.c.b16 %v298, %v297
  %v388 = vpack.c.b16 %v300, %v299
  %v389 = vpack.c.b16 %v302, %v301
  %v390 = vpack.c.b16 %v304, %v303
  %v391 = vpack.c.b16 %v306, %v305
  %v392 = vpack.c.b16 %v308, %v307
  %v393 = vpack.c.b16 %v310, %v309
  %v394 = vpack.c.b16 %v312, %v311
  %v395 = vpack.c.b16 %v314, %v313
  %v396 = vpack.c.b16 %v316, %v315
  %v397 = vpack.c.b16 %v318, %v317
  %v398 = vpack.c.b16 %v320, %v319
  %v399 = vpack.c.b16 %v322, %v321
  %v400 = vpack.c.b16 %v324, %v323
  %v401 = vpack.c.b16 %v326, %v325
  %v402 = vpack.c.b16 %v328, %v327
  %v403 = vpack.c.b16 %v330, %v329
  %v404 = vpack.c.b16 %v332, %v331
  %v405 = vpack.c.b16 %v334, %v333
  %v406 = vpack.c.b16 %v336, %v335
  %v407 = vpack.c.b16 %v338, %v337
  %v408 = vpack.c.b16 %v340, %v339
  %v409 = vpack.c.b16 %v342, %v341
  %v410 = vpack.c.b16 %v344, %v343
  %v411 = vpack.c.b16 %v346, %v345
  %v412 = vpack.c.b16 %v348, %v347
  %v413 = vpack.c.b16 %v350, %v349
  %v414 = vpack.c.b16 %v352, %v351
  %v415 = vpack.c.b16 %v354, %v353
  %v416 = vpack.c.b16 %v356, %v355
  %v417 = vpack.c.b16 %v358, %v357
  %v418 = vpack.c.b16 %v360, %v359
  %v419 = vpack.c.b16 %v362, %v361
  %v420 = vpack.c.b16 %v364, %v363
  %v421 = vpack.c.b16 %v366, %v365
  %v422 = vpack.c.b16 %v368, %v367
  %v423 = vpack.c.b16 %v370, %v369
  %v424 = vpack.c.b16 %v372, %v371
  %v425 = vpack.c.b16 %v374, %v373
  %v426 = vpack.c.b16 %v376, %v375
  %vm477 = vcmask 261120
  %v479 = vsel %vm477, %v170, 0
  %481 = vmatprep.subr.bf16.mxu0 0
  %482 = vmatpush1.bf16.msra.mxu0 %v377
  %483 = vmatprep.subr.bf16.mxu0 0
  %484 = vmatpush1.bf16.msra.mxu0 %v378
  %485 = vmatprep.subr.bf16.mxu0 0
  %486 = vmatpush1.bf16.msra.mxu0 %v379
  %487 = vmatprep.subr.bf16.mxu0 0
  %488 = vmatpush1.bf16.msra.mxu0 %v380
  %489 = vmatprep.subr.bf16.mxu0 0
  %490 = vmatpush1.bf16.msra.mxu0 %v381
  %491 = vmatprep.subr.bf16.mxu0 0
  %492 = vmatpush1.bf16.msra.mxu0 %v382
  %493 = vmatprep.subr.bf16.mxu0 0
  %494 = vmatpush1.bf16.msra.mxu0 %v383
  %495 = vmatprep.subr.bf16.mxu0 0
  %496 = vmatpush1.bf16.msra.mxu0 %v384
  %497 = vmatprep.subr.bf16.mxu0 0
  %498 = vmatpush1.bf16.msra.mxu0 %v385
  %499 = vmatprep.subr.bf16.mxu0 0
  %500 = vmatpush1.bf16.msra.mxu0 %v386
  %501 = vmatprep.subr.bf16.mxu0 0
  %502 = vmatpush1.bf16.msra.mxu0 %v387
  %503 = vmatprep.subr.bf16.mxu0 0
  %504 = vmatpush1.bf16.msra.mxu0 %v388
  %505 = vmatprep.subr.bf16.mxu0 0
  %506 = vmatpush1.bf16.msra.mxu0 %v389
  %507 = vmatprep.subr.bf16.mxu0 0
  %508 = vmatpush1.bf16.msra.mxu0 %v390
  %509 = vmatprep.subr.bf16.mxu0 0
  %510 = vmatpush1.bf16.msra.mxu0 %v391
  %511 = vmatprep.subr.bf16.mxu0 0
  %512 = vmatpush1.bf16.msra.mxu0 %v392
  %513 = vmatprep.mubr.bf16.mxu0 %v165
  %514 = vmatmul.mubr.bf16.gmra.mrb[0].mxu0 %v164
  %v515 = vpop.f32.mrb[0].mxu0
  %v516 = vadd.f32 %v151, %v515
  %v517 = vpop.f32.mrb[0].mxu0
  %v518 = vpop.f32.mrb[0].mxu0
  %v519 = vpop.f32.mrb[0].mxu0
  %520 = vdwg.mxu0
  %521 = vmatprep.subr.bf16.mxu0 0
  %522 = vmatpush1.bf16.msra.mxu0 %v393
  %523 = vmatprep.subr.bf16.mxu0 0
  %524 = vmatpush1.bf16.msra.mxu0 %v394
  %525 = vmatprep.subr.bf16.mxu0 0
  %526 = vmatpush1.bf16.msra.mxu0 %v395
  %527 = vmatprep.subr.bf16.mxu0 0
  %528 = vmatpush1.bf16.msra.mxu0 %v396
  %529 = vmatprep.subr.bf16.mxu0 0
  %530 = vmatpush1.bf16.msra.mxu0 %v397
  %531 = vmatprep.subr.bf16.mxu0 0
  %532 = vmatpush1.bf16.msra.mxu0 %v398
  %533 = vmatprep.subr.bf16.mxu0 0
  %534 = vmatpush1.bf16.msra.mxu0 %v399
  %535 = vmatprep.subr.bf16.mxu0 0
  %536 = vmatpush1.bf16.msra.mxu0 %v400
  %537 = vmatprep.subr.bf16.mxu0 0
  %538 = vmatpush1.bf16.msra.mxu0 %v401
  %539 = vmatprep.subr.bf16.mxu0 0
  %540 = vmatpush1.bf16.msra.mxu0 %v402
  %541 = vmatprep.subr.bf16.mxu0 0
  %542 = vmatpush1.bf16.msra.mxu0 %v403
  %543 = vmatprep.subr.bf16.mxu0 0
  %544 = vmatpush1.bf16.msra.mxu0 %v404
  %545 = vmatprep.subr.bf16.mxu0 0
  %546 = vmatpush1.bf16.msra.mxu0 %v405
  %547 = vmatprep.subr.bf16.mxu0 0
  %548 = vmatpush1.bf16.msra.mxu0 %v406
  %549 = vmatprep.subr.bf16.mxu0 0
  %550 = vmatpush1.bf16.msra.mxu0 %v407
  %551 = vmatprep.subr.bf16.mxu0 0
  %552 = vmatpush1.bf16.msra.mxu0 %v408
  %553 = vmatprep.mubr.bf16.mxu0 %v167
  %554 = vmatmul.mubr.bf16.gmra.mrb[0].mxu0 %v166
  %v555 = vpop.f32.mrb[0].mxu0
  %v556 = vadd.f32 %v516, %v555
  %v557 = vpop.f32.mrb[0].mxu0
  %v558 = vpop.f32.mrb[0].mxu0
  %v559 = vpop.f32.mrb[0].mxu0
  %560 = vdwg.mxu0
  %561 = vmatprep.subr.bf16.mxu0 0
  %562 = vmatpush1.bf16.msra.mxu0 %v409
  %563 = vmatprep.subr.bf16.mxu0 0
  %564 = vmatpush1.bf16.msra.mxu0 %v410
  %565 = vmatprep.subr.bf16.mxu0 0
  %566 = vmatpush1.bf16.msra.mxu0 %v411
  %567 = vmatprep.subr.bf16.mxu0 0
  %568 = vmatpush1.bf16.msra.mxu0 %v412
  %569 = vmatprep.subr.bf16.mxu0 0
  %570 = vmatpush1.bf16.msra.mxu0 %v413
  %571 = vmatprep.subr.bf16.mxu0 0
  %572 = vmatpush1.bf16.msra.mxu0 %v414
  %573 = vmatprep.subr.bf16.mxu0 0
  %574 = vmatpush1.bf16.msra.mxu0 %v415
  %575 = vmatprep.subr.bf16.mxu0 0
  %576 = vmatpush1.bf16.msra.mxu0 %v416
  %577 = vmatprep.subr.bf16.mxu0 0
  %578 = vmatpush1.bf16.msra.mxu0 %v417
  %579 = vmatprep.subr.bf16.mxu0 0
  %580 = vmatpush1.bf16.msra.mxu0 %v418
  %581 = vmatprep.subr.bf16.mxu0 0
  %582 = vmatpush1.bf16.msra.mxu0 %v419
  %583 = vmatprep.subr.bf16.mxu0 0
  %584 = vmatpush1.bf16.msra.mxu0 %v420
  %585 = vmatprep.subr.bf16.mxu0 0
  %586 = vmatpush1.bf16.msra.mxu0 %v421
  %587 = vmatprep.subr.bf16.mxu0 0
  %588 = vmatpush1.bf16.msra.mxu0 %v422
  %589 = vmatprep.subr.bf16.mxu0 0
  %590 = vmatpush1.bf16.msra.mxu0 %v423
  %591 = vmatprep.subr.bf16.mxu0 0
  %592 = vmatpush1.bf16.msra.mxu0 %v424
  %593 = vmatprep.mubr.bf16.mxu0 %v169
  %594 = vmatmul.mubr.bf16.gmra.mrb[0].mxu0 %v168
  %v595 = vpop.f32.mrb[0].mxu0
  %v596 = vadd.f32 %v556, %v595
  %v597 = vpop.f32.mrb[0].mxu0
  %v598 = vpop.f32.mrb[0].mxu0
  %v599 = vpop.f32.mrb[0].mxu0
  %600 = vdwg.mxu0
  %601 = vmatprep.subr.bf16.mxu0 0
  %602 = vmatpush1.bf16.msra.mxu0 %v425
  %603 = vmatprep.subr.bf16.mxu0 0
  %604 = vmatpush1.bf16.msra.mxu0 %v426
  %605 = vmatprep.subr.bf16.mxu0 0
  %606 = vmatpush1.bf16.msra.mxu0 0
  %607 = vmatprep.subr.bf16.mxu0 0
  %608 = vmatpush1.bf16.msra.mxu0 0
  %609 = vmatprep.subr.bf16.mxu0 0
  %610 = vmatpush1.bf16.msra.mxu0 0
  %611 = vmatprep.subr.bf16.mxu0 0
  %612 = vmatpush1.bf16.msra.mxu0 0
  %613 = vmatprep.subr.bf16.mxu0 0
  %614 = vmatpush1.bf16.msra.mxu0 0
  %615 = vmatprep.subr.bf16.mxu0 0
  %616 = vmatpush1.bf16.msra.mxu0 0
  %617 = vmatprep.subr.bf16.mxu0 0
  %618 = vmatpush1.bf16.msra.mxu0 0
  %619 = vmatprep.subr.bf16.mxu0 0
  %620 = vmatpush1.bf16.msra.mxu0 0
  %621 = vmatprep.subr.bf16.mxu0 0
  %622 = vmatpush1.bf16.msra.mxu0 0
  %623 = vmatprep.subr.bf16.mxu0 0
  %624 = vmatpush1.bf16.msra.mxu0 0
  %625 = vmatprep.subr.bf16.mxu0 0
  %626 = vmatpush1.bf16.msra.mxu0 0
  %627 = vmatprep.subr.bf16.mxu0 0
  %628 = vmatpush1.bf16.msra.mxu0 0
  %629 = vmatprep.subr.bf16.mxu0 0
  %630 = vmatpush1.bf16.msra.mxu0 0
  %631 = vmatprep.subr.bf16.mxu0 0
  %632 = vmatpush1.bf16.msra.mxu0 0
  %633 = vmatprep.mubr.bf16.mxu0 0
  %634 = vmatmul.mubr.bf16.gmra.mrb[0].mxu0 %v479
  %v635 = vpop.f32.mrb[0].mxu0
  %v636 = vadd.f32 %v596, %v635
  %v637 = vpop.f32.mrb[0].mxu0
  %v638 = vpop.f32.mrb[0].mxu0
  %v639 = vpop.f32.mrb[0].mxu0
  %640 = vdwg.mxu0
  %v641 = vmax.f32 %v636, 0.0
  %v642 = vld [vmem:[%s3] sm:$0xf]
  %v643 = vld [vmem:[%s3 + $0x4] sm:$0xf]
  %v644 = vld [vmem:[%s3 + $0x8] sm:$0xf]
  %v645 = vld [vmem:[%s3 + $0xc] sm:$0xf]
  %v646 = vld [vmem:[%s3 + $0x10] sm:$0xf]
  %v647 = vld [vmem:[%s3 + $0x14] sm:$0xf]
  %v648 = vld [vmem:[%s3 + $0x18] sm:$0xf]
  %v649 = vld [vmem:[%s3 + $0x1c] sm:$0xf]
  %v650 = vld [vmem:[%s3 + $0x20] sm:$0xf]
  %v651 = vld [vmem:[%s3 + $0x24] sm:$0xf]
  %v652 = vld [vmem:[%s3 + $0x28] sm:$0xf]
  %v653 = vld [vmem:[%s3 + $0x2c] sm:$0xf]
  %v654 = vld [vmem:[%s3 + $0x30] sm:$0xf]
  %v655 = vld [vmem:[%s3 + $0x34] sm:$0xf]
  %v656 = vld [vmem:[%s3 + $0x38] sm:$0xf]
  %v657 = vld [vmem:[%s3 + $0x3c] sm:$0xf]
  %v658 = vpack.c.bf16 %v641, %v641
  %v659 = vld [vmem:[%s4] sm:$0x1]
  %v661 = vlaneseq
  %v662 = vshrl.u32 %v661, 7
  %v663 = vsub.s32 0, %v662
  %v664 = vrot.slane %v659, %v663
  %v682 = vunpack.c.l.b16 %v642
  %v683 = vunpack.c.l.b16 %v643
  %v684 = vunpack.c.l.b16 %v644
  %v685 = vunpack.c.l.b16 %v645
  %v686 = vunpack.c.l.b16 %v646
  %v687 = vunpack.c.l.b16 %v647
  %v688 = vunpack.c.l.b16 %v648
  %v689 = vunpack.c.l.b16 %v649
  %v690 = vunpack.c.l.b16 %v650
  %v691 = vunpack.c.l.b16 %v651
  %v692 = vunpack.c.l.b16 %v652
  %v693 = vunpack.c.l.b16 %v653
  %v694 = vunpack.c.l.b16 %v654
  %v695 = vunpack.c.l.b16 %v655
  %v696 = vunpack.c.l.b16 %v656
  %v697 = vunpack.c.l.b16 %v657
  %v698 = vpack.c.b16 %v683, %v682
  %v699 = vpack.c.b16 %v685, %v684
  %v700 = vpack.c.b16 %v687, %v686
  %v701 = vpack.c.b16 %v689, %v688
  %v702 = vpack.c.b16 %v691, %v690
  %v703 = vpack.c.b16 %v693, %v692
  %v704 = vpack.c.b16 %v695, %v694
  %v705 = vpack.c.b16 %v697, %v696
  %714 = vmatprep.subr.bf16.mxu0 0
  %715 = vmatpush1.bf16.msra.mxu0 %v698
  %716 = vmatprep.subr.bf16.mxu0 0
  %717 = vmatpush1.bf16.msra.mxu0 %v699
  %718 = vmatprep.subr.bf16.mxu0 0
  %719 = vmatpush1.bf16.msra.mxu0 %v700
  %720 = vmatprep.subr.bf16.mxu0 0
  %721 = vmatpush1.bf16.msra.mxu0 %v701
  %722 = vmatprep.subr.bf16.mxu0 0
  %723 = vmatpush1.bf16.msra.mxu0 %v702
  %724 = vmatprep.subr.bf16.mxu0 0
  %725 = vmatpush1.bf16.msra.mxu0 %v703
  %726 = vmatprep.subr.bf16.mxu0 0
  %727 = vmatpush1.bf16.msra.mxu0 %v704
  %728 = vmatprep.subr.bf16.mxu0 0
  %729 = vmatpush1.bf16.msra.mxu0 %v705
  %730 = vmatprep.subr.bf16.mxu0 0
  %731 = vmatpush1.bf16.msra.mxu0 0
  %732 = vmatprep.subr.bf16.mxu0 0
  %733 = vmatpush1.bf16.msra.mxu0 0
  %734 = vmatprep.subr.bf16.mxu0 0
  %735 = vmatpush1.bf16.msra.mxu0 0
  %736 = vmatprep.subr.bf16.mxu0 0
  %737 = vmatpush1.bf16.msra.mxu0 0
  %738 = vmatprep.subr.bf16.mxu0 0
  %739 = vmatpush1.bf16.msra.mxu0 0
  %740 = vmatprep.subr.bf16.mxu0 0
  %741 = vmatpush1.bf16.msra.mxu0 0
  %742 = vmatprep.subr.bf16.mxu0 0
  %743 = vmatpush1.bf16.msra.mxu0 0
  %744 = vmatprep.subr.bf16.mxu0 0
  %745 = vmatpush1.bf16.msra.mxu0 0
  %746 = vmatprep.mubr.bf16.mxu0 0
  %747 = vmatmul.mubr.bf16.gmra.mrb[0].mxu0 %v658
  %v748 = vpop.f32.mrb[0].mxu0
  %v749 = vadd.f32 %v664, %v748
  %v750 = vpop.f32.mrb[0].mxu0
  %v751 = vpop.f32.mrb[0].mxu0
  %v752 = vpop.f32.mrb[0].mxu0
  %753 = vdwg.mxu0
  %v754 = vmax.f32 %v749, 0.0
  %755 = vst [vmem:[%s11] sm:$0xff] %v754
  %v756 = vld [vmem:[%s5] sm:$0xf]
  %v757 = vld [vmem:[%s5 + $0x4] sm:$0xf]
  %v758 = vld [vmem:[%s5 + $0x8] sm:$0xf]
  %v759 = vld [vmem:[%s5 + $0xc] sm:$0xf]
  %v760 = vld [vmem:[%s5 + $0x10] sm:$0xf]
  %v761 = vld [vmem:[%s5 + $0x14] sm:$0xf]
  %v762 = vld [vmem:[%s5 + $0x18] sm:$0xf]
  %v763 = vld [vmem:[%s5 + $0x1c] sm:$0xf]
  %v764 = vld [vmem:[%s5 + $0x20] sm:$0xf]
  %v765 = vld [vmem:[%s5 + $0x24] sm:$0xf]
  %v766 = vld [vmem:[%s5 + $0x28] sm:$0xf]
  %v767 = vld [vmem:[%s5 + $0x2c] sm:$0xf]
  %v768 = vld [vmem:[%s5 + $0x30] sm:$0xf]
  %v769 = vld [vmem:[%s5 + $0x34] sm:$0xf]
  %v770 = vld [vmem:[%s5 + $0x38] sm:$0xf]
  %v771 = vld [vmem:[%s5 + $0x3c] sm:$0xf]
  %v772 = vpack.c.bf16 %v754, %v754
  %v773 = vld [vmem:[%s6] sm:$0x1]
  %v775 = vlaneseq
  %v776 = vshrl.u32 %v775, 7
  %v777 = vsub.s32 0, %v776
  %v778 = vrot.slane %v773, %v777
  %v796 = vunpack.c.l.b16 %v756
  %v797 = vunpack.c.l.b16 %v757
  %v798 = vunpack.c.l.b16 %v758
  %v799 = vunpack.c.l.b16 %v759
  %v800 = vunpack.c.l.b16 %v760
  %v801 = vunpack.c.l.b16 %v761
  %v802 = vunpack.c.l.b16 %v762
  %v803 = vunpack.c.l.b16 %v763
  %v804 = vunpack.c.l.b16 %v764
  %v805 = vunpack.c.l.b16 %v765
  %v806 = vunpack.c.l.b16 %v766
  %v807 = vunpack.c.l.b16 %v767
  %v808 = vunpack.c.l.b16 %v768
  %v809 = vunpack.c.l.b16 %v769
  %v810 = vunpack.c.l.b16 %v770
  %v811 = vunpack.c.l.b16 %v771
  %v812 = vpack.c.b16 %v797, %v796
  %v813 = vpack.c.b16 %v799, %v798
  %v814 = vpack.c.b16 %v801, %v800
  %v815 = vpack.c.b16 %v803, %v802
  %v816 = vpack.c.b16 %v805, %v804
  %v817 = vpack.c.b16 %v807, %v806
  %v818 = vpack.c.b16 %v809, %v808
  %v819 = vpack.c.b16 %v811, %v810
  %828 = vmatprep.subr.bf16.mxu0 0
  %829 = vmatpush1.bf16.msra.mxu0 %v812
  %830 = vmatprep.subr.bf16.mxu0 0
  %831 = vmatpush1.bf16.msra.mxu0 %v813
  %832 = vmatprep.subr.bf16.mxu0 0
  %833 = vmatpush1.bf16.msra.mxu0 %v814
  %834 = vmatprep.subr.bf16.mxu0 0
  %835 = vmatpush1.bf16.msra.mxu0 %v815
  %836 = vmatprep.subr.bf16.mxu0 0
  %837 = vmatpush1.bf16.msra.mxu0 %v816
  %838 = vmatprep.subr.bf16.mxu0 0
  %839 = vmatpush1.bf16.msra.mxu0 %v817
  %840 = vmatprep.subr.bf16.mxu0 0
  %841 = vmatpush1.bf16.msra.mxu0 %v818
  %842 = vmatprep.subr.bf16.mxu0 0
  %843 = vmatpush1.bf16.msra.mxu0 %v819
  %844 = vmatprep.subr.bf16.mxu0 0
  %845 = vmatpush1.bf16.msra.mxu0 0
  %846 = vmatprep.subr.bf16.mxu0 0
  %847 = vmatpush1.bf16.msra.mxu0 0
  %848 = vmatprep.subr.bf16.mxu0 0
  %849 = vmatpush1.bf16.msra.mxu0 0
  %850 = vmatprep.subr.bf16.mxu0 0
  %851 = vmatpush1.bf16.msra.mxu0 0
  %852 = vmatprep.subr.bf16.mxu0 0
  %853 = vmatpush1.bf16.msra.mxu0 0
  %854 = vmatprep.subr.bf16.mxu0 0
  %855 = vmatpush1.bf16.msra.mxu0 0
  %856 = vmatprep.subr.bf16.mxu0 0
  %857 = vmatpush1.bf16.msra.mxu0 0
  %858 = vmatprep.subr.bf16.mxu0 0
  %859 = vmatpush1.bf16.msra.mxu0 0
  %860 = vmatprep.mubr.bf16.mxu0 0
  %861 = vmatmul.mubr.bf16.gmra.mrb[0].mxu0 %v772
  %v862 = vpop.f32.mrb[0].mxu0
  %v863 = vadd.f32 %v778, %v862
  %v864 = vpop.f32.mrb[0].mxu0
  %v865 = vpop.f32.mrb[0].mxu0
  %v866 = vpop.f32.mrb[0].mxu0
  %867 = vdwg.mxu0
  %v868 = vmax.f32 %v863, 0.0
  %v869 = vld [vmem:[%s7] sm:$0xff]
  %v870 = vld [vmem:[%s7 + $0x8] sm:$0xff]
  %v871 = vld [vmem:[%s7 + $0x10] sm:$0xff]
  %v872 = vld [vmem:[%s7 + $0x18] sm:$0xff]
  %v873 = vld [vmem:[%s7 + $0x20] sm:$0xff]
  %v874 = vld [vmem:[%s7 + $0x28] sm:$0xff]
  %v875 = vld [vmem:[%s7 + $0x30] sm:$0xff]
  %v876 = vld [vmem:[%s7 + $0x38] sm:$0xff]
  %v877 = vld [vmem:[%s7 + $0x40] sm:$0xff]
  %v878 = vld [vmem:[%s7 + $0x48] sm:$0xff]
  %v879 = vld [vmem:[%s7 + $0x50] sm:$0xff]
  %v880 = vld [vmem:[%s7 + $0x58] sm:$0xff]
  %v881 = vld [vmem:[%s7 + $0x60] sm:$0xff]
  %v882 = vld [vmem:[%s7 + $0x68] sm:$0xff]
  %v883 = vld [vmem:[%s7 + $0x70] sm:$0xff]
  %v884 = vld [vmem:[%s7 + $0x78] sm:$0xff]
  %v885 = vpack.c.bf16 %v868, %v868
  %v886 = vld [vmem:[%s8] sm:$0x3]
  %v888 = vlaneseq
  %v889 = vshrl.u32 %v888, 7
  %v890 = vsub.s32 0, %v889
  %v891 = vrot.slane %v886, %v890
  %v892 = vlaneseq
  %v893 = vshrl.u32 %v892, 7
  %v894 = vsub.s32 1, %v893
  %v895 = vrot.slane %v886, %v894
  %v914 = vunpack.c.l.b16 %v869
  %v915 = vunpack.c.h.b16 %v869
  %v916 = vunpack.c.l.b16 %v870
  %v917 = vunpack.c.h.b16 %v870
  %v918 = vunpack.c.l.b16 %v871
  %v919 = vunpack.c.h.b16 %v871
  %v920 = vunpack.c.l.b16 %v872
  %v921 = vunpack.c.h.b16 %v872
  %v922 = vunpack.c.l.b16 %v873
  %v923 = vunpack.c.h.b16 %v873
  %v924 = vunpack.c.l.b16 %v874
  %v925 = vunpack.c.h.b16 %v874
  %v926 = vunpack.c.l.b16 %v875
  %v927 = vunpack.c.h.b16 %v875
  %v928 = vunpack.c.l.b16 %v876
  %v929 = vunpack.c.h.b16 %v876
  %v930 = vunpack.c.l.b16 %v877
  %v931 = vunpack.c.h.b16 %v877
  %v932 = vunpack.c.l.b16 %v878
  %v933 = vunpack.c.h.b16 %v878
  %v934 = vunpack.c.l.b16 %v879
  %v935 = vunpack.c.h.b16 %v879
  %v936 = vunpack.c.l.b16 %v880
  %v937 = vunpack.c.h.b16 %v880
  %v938 = vunpack.c.l.b16 %v881
  %v939 = vunpack.c.h.b16 %v881
  %v940 = vunpack.c.l.b16 %v882
  %v941 = vunpack.c.h.b16 %v882
  %v942 = vunpack.c.l.b16 %v883
  %v943 = vunpack.c.h.b16 %v883
  %v944 = vunpack.c.l.b16 %v884
  %v945 = vunpack.c.h.b16 %v884
  %v946 = vpack.c.b16 %v916, %v914
  %v947 = vpack.c.b16 %v917, %v915
  %v948 = vpack.c.b16 %v920, %v918
  %v949 = vpack.c.b16 %v921, %v919
  %v950 = vpack.c.b16 %v924, %v922
  %v951 = vpack.c.b16 %v925, %v923
  %v952 = vpack.c.b16 %v928, %v926
  %v953 = vpack.c.b16 %v929, %v927
  %v954 = vpack.c.b16 %v932, %v930
  %v955 = vpack.c.b16 %v933, %v931
  %v956 = vpack.c.b16 %v936, %v934
  %v957 = vpack.c.b16 %v937, %v935
  %v958 = vpack.c.b16 %v940, %v938
  %v959 = vpack.c.b16 %v941, %v939
  %v960 = vpack.c.b16 %v944, %v942
  %v961 = vpack.c.b16 %v945, %v943
  %978 = vmatprep.subr.bf16.mxu0 %v947
  %979 = vmatpush1.bf16.msra.mxu0 %v946
  %980 = vmatprep.subr.bf16.mxu0 %v949
  %981 = vmatpush1.bf16.msra.mxu0 %v948
  %982 = vmatprep.subr.bf16.mxu0 %v951
  %983 = vmatpush1.bf16.msra.mxu0 %v950
  %984 = vmatprep.subr.bf16.mxu0 %v953
  %985 = vmatpush1.bf16.msra.mxu0 %v952
  %986 = vmatprep.subr.bf16.mxu0 %v955
  %987 = vmatpush1.bf16.msra.mxu0 %v954
  %988 = vmatprep.subr.bf16.mxu0 %v957
  %989 = vmatpush1.bf16.msra.mxu0 %v956
  %990 = vmatprep.subr.bf16.mxu0 %v959
  %991 = vmatpush1.bf16.msra.mxu0 %v958
  %992 = vmatprep.subr.bf16.mxu0 %v961
  %993 = vmatpush1.bf16.msra.mxu0 %v960
  %994 = vmatprep.subr.bf16.mxu0 0
  %995 = vmatpush1.bf16.msra.mxu0 0
  %996 = vmatprep.subr.bf16.mxu0 0
  %997 = vmatpush1.bf16.msra.mxu0 0
  %998 = vmatprep.subr.bf16.mxu0 0
  %999 = vmatpush1.bf16.msra.mxu0 0
  %1000 = vmatprep.subr.bf16.mxu0 0
  %1001 = vmatpush1.bf16.msra.mxu0 0
  %1002 = vmatprep.subr.bf16.mxu0 0
  %1003 = vmatpush1.bf16.msra.mxu0 0
  %1004 = vmatprep.subr.bf16.mxu0 0
  %1005 = vmatpush1.bf16.msra.mxu0 0
  %1006 = vmatprep.subr.bf16.mxu0 0
  %1007 = vmatpush1.bf16.msra.mxu0 0
  %1008 = vmatprep.subr.bf16.mxu0 0
  %1009 = vmatpush1.bf16.msra.mxu0 0
  %1010 = vmatprep.mubr.bf16.mxu0 0
  %1011 = vmatmul.mubr.bf16.gmra.mrb[0].mxu0 %v885
  %v1012 = vpop.f32.mrb[0].mxu0
  %v1013 = vadd.f32 %v891, %v1012
  %v1014 = vpop.f32.mrb[0].mxu0
  %v1015 = vadd.f32 %v895, %v1014
  %v1016 = vpop.f32.mrb[0].mxu0
  %v1017 = vpop.f32.mrb[0].mxu0
  %1018 = vdwg.mxu0
  %1019 = vst [vmem:[%s12] sm:$0xff] %v1013
  %1020 = vst [vmem:[%s12 + $0x8] sm:$0xff] %v1015
  %v1021 = vld [vmem:[%s9] sm:$0xf]
  %v1022 = vld [vmem:[%s9 + $0x4] sm:$0xf]
  %v1023 = vld [vmem:[%s9 + $0x8] sm:$0xf]
  %v1024 = vld [vmem:[%s9 + $0xc] sm:$0xf]
  %v1025 = vld [vmem:[%s9 + $0x10] sm:$0xf]
  %v1026 = vld [vmem:[%s9 + $0x14] sm:$0xf]
  %v1027 = vld [vmem:[%s9 + $0x18] sm:$0xf]
  %v1028 = vld [vmem:[%s9 + $0x1c] sm:$0xf]
  %v1029 = vld [vmem:[%s9 + $0x20] sm:$0xf]
  %v1030 = vld [vmem:[%s9 + $0x24] sm:$0xf]
  %v1031 = vld [vmem:[%s9 + $0x28] sm:$0xf]
  %v1032 = vld [vmem:[%s9 + $0x2c] sm:$0xf]
  %v1033 = vld [vmem:[%s9 + $0x30] sm:$0xf]
  %v1034 = vld [vmem:[%s9 + $0x34] sm:$0xf]
  %v1035 = vld [vmem:[%s9 + $0x38] sm:$0xf]
  %v1036 = vld [vmem:[%s9 + $0x3c] sm:$0xf]
  %v1037 = vld [vmem:[%s9 + $0x40] sm:$0xf]
  %v1038 = vld [vmem:[%s9 + $0x44] sm:$0xf]
  %v1039 = vld [vmem:[%s9 + $0x48] sm:$0xf]
  %v1040 = vld [vmem:[%s9 + $0x4c] sm:$0xf]
  %v1041 = vld [vmem:[%s9 + $0x50] sm:$0xf]
  %v1042 = vld [vmem:[%s9 + $0x54] sm:$0xf]
  %v1043 = vld [vmem:[%s9 + $0x58] sm:$0xf]
  %v1044 = vld [vmem:[%s9 + $0x5c] sm:$0xf]
  %v1045 = vld [vmem:[%s9 + $0x60] sm:$0xf]
  %v1046 = vld [vmem:[%s9 + $0x64] sm:$0xf]
  %v1047 = vld [vmem:[%s9 + $0x68] sm:$0xf]
  %v1048 = vld [vmem:[%s9 + $0x6c] sm:$0xf]
  %v1049 = vld [vmem:[%s9 + $0x70] sm:$0xf]
  %v1050 = vld [vmem:[%s9 + $0x74] sm:$0xf]
  %v1051 = vld [vmem:[%s9 + $0x78] sm:$0xf]
  %v1052 = vld [vmem:[%s9 + $0x7c] sm:$0xf]
  %v1053 = vpack.c.bf16 %v1013, %v1013
  %v1054 = vpack.c.bf16 %v1015, %v1015
  %v1055 = vld [vmem:[%s10] sm:$0x1]
  %v1057 = vlaneseq
  %v1058 = vshrl.u32 %v1057, 7
  %v1059 = vsub.s32 0, %v1058
  %v1060 = vrot.slane %v1055, %v1059
  %v1094 = vunpack.c.l.b16 %v1021
  %v1095 = vunpack.c.l.b16 %v1022
  %v1096 = vunpack.c.l.b16 %v1023
  %v1097 = vunpack.c.l.b16 %v1024
  %v1098 = vunpack.c.l.b16 %v1025
  %v1099 = vunpack.c.l.b16 %v1026
  %v1100 = vunpack.c.l.b16 %v1027
  %v1101 = vunpack.c.l.b16 %v1028
  %v1102 = vunpack.c.l.b16 %v1029
  %v1103 = vunpack.c.l.b16 %v1030
  %v1104 = vunpack.c.l.b16 %v1031
  %v1105 = vunpack.c.l.b16 %v1032
  %v1106 = vunpack.c.l.b16 %v1033
  %v1107 = vunpack.c.l.b16 %v1034
  %v1108 = vunpack.c.l.b16 %v1035
  %v1109 = vunpack.c.l.b16 %v1036
  %v1110 = vunpack.c.l.b16 %v1037
  %v1111 = vunpack.c.l.b16 %v1038
  %v1112 = vunpack.c.l.b16 %v1039
  %v1113 = vunpack.c.l.b16 %v1040
  %v1114 = vunpack.c.l.b16 %v1041
  %v1115 = vunpack.c.l.b16 %v1042
  %v1116 = vunpack.c.l.b16 %v1043
  %v1117 = vunpack.c.l.b16 %v1044
  %v1118 = vunpack.c.l.b16 %v1045
  %v1119 = vunpack.c.l.b16 %v1046
  %v1120 = vunpack.c.l.b16 %v1047
  %v1121 = vunpack.c.l.b16 %v1048
  %v1122 = vunpack.c.l.b16 %v1049
  %v1123 = vunpack.c.l.b16 %v1050
  %v1124 = vunpack.c.l.b16 %v1051
  %v1125 = vunpack.c.l.b16 %v1052
  %v1126 = vpack.c.b16 %v1095, %v1094
  %v1127 = vpack.c.b16 %v1097, %v1096
  %v1128 = vpack.c.b16 %v1099, %v1098
  %v1129 = vpack.c.b16 %v1101, %v1100
  %v1130 = vpack.c.b16 %v1103, %v1102
  %v1131 = vpack.c.b16 %v1105, %v1104
  %v1132 = vpack.c.b16 %v1107, %v1106
  %v1133 = vpack.c.b16 %v1109, %v1108
  %v1134 = vpack.c.b16 %v1111, %v1110
  %v1135 = vpack.c.b16 %v1113, %v1112
  %v1136 = vpack.c.b16 %v1115, %v1114
  %v1137 = vpack.c.b16 %v1117, %v1116
  %v1138 = vpack.c.b16 %v1119, %v1118
  %v1139 = vpack.c.b16 %v1121, %v1120
  %v1140 = vpack.c.b16 %v1123, %v1122
  %v1141 = vpack.c.b16 %v1125, %v1124
  %1158 = vmatprep.subr.bf16.mxu0 0
  %1159 = vmatpush1.bf16.msra.mxu0 %v1126
  %1160 = vmatprep.subr.bf16.mxu0 0
  %1161 = vmatpush1.bf16.msra.mxu0 %v1127
  %1162 = vmatprep.subr.bf16.mxu0 0
  %1163 = vmatpush1.bf16.msra.mxu0 %v1128
  %1164 = vmatprep.subr.bf16.mxu0 0
  %1165 = vmatpush1.bf16.msra.mxu0 %v1129
  %1166 = vmatprep.subr.bf16.mxu0 0
  %1167 = vmatpush1.bf16.msra.mxu0 %v1130
  %1168 = vmatprep.subr.bf16.mxu0 0
  %1169 = vmatpush1.bf16.msra.mxu0 %v1131
  %1170 = vmatprep.subr.bf16.mxu0 0
  %1171 = vmatpush1.bf16.msra.mxu0 %v1132
  %1172 = vmatprep.subr.bf16.mxu0 0
  %1173 = vmatpush1.bf16.msra.mxu0 %v1133
  %1174 = vmatprep.subr.bf16.mxu0 0
  %1175 = vmatpush1.bf16.msra.mxu0 %v1134
  %1176 = vmatprep.subr.bf16.mxu0 0
  %1177 = vmatpush1.bf16.msra.mxu0 %v1135
  %1178 = vmatprep.subr.bf16.mxu0 0
  %1179 = vmatpush1.bf16.msra.mxu0 %v1136
  %1180 = vmatprep.subr.bf16.mxu0 0
  %1181 = vmatpush1.bf16.msra.mxu0 %v1137
  %1182 = vmatprep.subr.bf16.mxu0 0
  %1183 = vmatpush1.bf16.msra.mxu0 %v1138
  %1184 = vmatprep.subr.bf16.mxu0 0
  %1185 = vmatpush1.bf16.msra.mxu0 %v1139
  %1186 = vmatprep.subr.bf16.mxu0 0
  %1187 = vmatpush1.bf16.msra.mxu0 %v1140
  %1188 = vmatprep.subr.bf16.mxu0 0
  %1189 = vmatpush1.bf16.msra.mxu0 %v1141
  %1190 = vmatprep.mubr.bf16.mxu0 %v1054
  %1191 = vmatmul.mubr.bf16.gmra.mrb[0].mxu0 %v1053
  %v1192 = vpop.f32.mrb[0].mxu0
  %v1193 = vadd.f32 %v1060, %v1192
  %v1194 = vpop.f32.mrb[0].mxu0
  %v1195 = vpop.f32.mrb[0].mxu0
  %v1196 = vpop.f32.mrb[0].mxu0
  %1197 = vdwg.mxu0
  %1198 = vst [vmem:[%s13] sm:$0xff] %v1193
  // Predicated region
  $region46: #{moon_lenet_forward.5} parent=0 // pred_check
    _
  $region47: #{moon_lenet_forward.5} parent=0 // pred_check_branch
    %1200 = sbr.rel (0) target = $region49
  $region48: #{moon_lenet_forward.5} parent=0 // pred_region
    _
  $region49: #{moon_lenet_forward.5} parent=0 // pred_fallthru
    _
  // Predicated region
  $region50: #{moon_lenet_forward.5} parent=0 // pred_check
    _
  $region51: #{moon_lenet_forward.5} parent=0 // pred_check_branch
    %1202 = sbr.rel (0) target = $region53
  $region52: #{moon_lenet_forward.5} parent=0 // pred_region
    _
  $region53: #{moon_lenet_forward.5} parent=0 // pred_fallthru
    _
  // Predicated region
  $region54: #{moon_lenet_forward.5} parent=0 // pred_check
    _
  $region55: #{moon_lenet_forward.5} parent=0 // pred_check_branch
    %1204 = sbr.rel (0) target = $region57
  $region56: #{moon_lenet_forward.5} parent=0 // pred_region
    _
  $region57: #{moon_lenet_forward.5} parent=0 // pred_fallthru
    _
  // Predicated region
  $region58: #{moon_lenet_forward.5} parent=0 // pred_check
    _
  $region59: #{moon_lenet_forward.5} parent=0 // pred_check_branch
    %1206 = sbr.rel (0) target = $region61
  $region60: #{moon_lenet_forward.5} parent=0 // pred_region
    _
  $region61: #{moon_lenet_forward.5} parent=0 // pred_fallthru
    _
  // Predicated region
  $region62: #{moon_lenet_forward.5} parent=0 // pred_check
    _
  $region63: #{moon_lenet_forward.5} parent=0 // pred_check_branch
    %1208 = sbr.rel (0) target = $region65
  $region64: #{moon_lenet_forward.5} parent=0 // pred_region
    _
  $region65: #{moon_lenet_forward.5} parent=0 // pred_fallthru
    _
  // Predicated region
  $region66: #{moon_lenet_forward.5} parent=0 // pred_check
    _
  $region67: #{moon_lenet_forward.5} parent=0 // pred_check_branch
    %1210 = sbr.rel (0) target = $region69
  $region68: #{moon_lenet_forward.5} parent=0 // pred_region
    _
  $region69: #{moon_lenet_forward.5} parent=0 // pred_fallthru
    _

</llo_original>
